<compile_context>
chip_gen: v7x
topology: tpu7x:2x2x1
jax: 0.10.0
libtpu: 0.0.40
codegen_flags: <defaults>
</compile_context>

<pallas_src>
import jax
import jax.numpy as jnp
from jax.experimental import pallas as pl
from jax.experimental.pallas import tpu as pltpu


def _round_up(x, m):
    return -(-x // m) * m


def _choose_tiles(Dp, w_budget_bytes):
    """Pick (tn, tk, nb, kb) for the W tiling.

    Largest W tile whose buffered bf16 copies fit `w_budget_bytes`, while
    keeping nb (the parallel N axis) even so both v7x TensorCores get weight
    columns.  Tiles always divide Dp and are multiples of 128 lanes.
    """
    nb = 2
    while nb <= Dp // 128:
        if Dp % nb == 0 and (Dp // nb) % 128 == 0:
            tn = Dp // nb
            kb = 1
            while kb <= Dp // 128:
                if Dp % kb == 0 and (Dp // kb) % 128 == 0:
                    tk = Dp // kb
                    n_bufs = 3 if kb >= 4 else 2
                    if n_bufs * tk * tn * 2 <= w_budget_bytes:
                        return tn, tk, nb, kb
                kb += 1
        nb += 2
    # Last resort (tiny budget / odd shapes): 128x128 tiles.
    return 128, 128, Dp // 128, Dp // 128


def _network_kernel(coef_ref, x_ref, w_ref, b_ref, x0_ref, score_ref):
    """Fused eps-network forward + predict_x0 + score (single weight pass).

    Grid = (N_tiles, K_tiles); reduction (K) axis last.

    coef_ref  : SMEM (3,)      f32  -- [1/sqrt(acp), sqrt(1-acp)/sqrt(acp), -1/sqrt(1-acp)]
    x_ref     : VMEM (Bp, Dp)  f32  -- full x, resident across the grid (one DMA)
    w_ref     : VMEM (tk, tn)  bf16 -- weight block
    b_ref     : VMEM (1, tn)   f32  -- bias block
    x0_ref    : VMEM (Bp, tn)  f32  -- predict_x0 output block
    score_ref : VMEM (Bp, tn)  f32  -- score output block; doubles as the f32
                                       eps accumulator across the K axis
    """
    n = pl.program_id(0)
    k = pl.program_id(1)
    tk, tn = w_ref.shape

    @pl.when(k == 0)
    def _():
        # Seed the eps accumulator with the bias (no separate scratch needed).
        score_ref[...] = jnp.broadcast_to(b_ref[...], score_ref.shape)

    # MXU lhs: K-slice of the resident f32 x block, cast to bf16 in-kernel.
    k_off = pl.multiple_of(k * tk, 128)
    lhs = x_ref[:, pl.ds(k_off, tk)].astype(jnp.bfloat16)
    score_ref[...] += jnp.dot(lhs, w_ref[...],
                              preferred_element_type=jnp.float32)

    @pl.when(k == pl.num_programs(1) - 1)
    def _():
        eps = score_ref[...]
        n_off = pl.multiple_of(n * tn, 128)
        x_res = x_ref[:, pl.ds(n_off, tn)]          # residual slice (f32)
        x0_ref[...] = coef_ref[0] * x_res - coef_ref[1] * eps
        score_ref[...] = coef_ref[2] * eps


class PallasNetwork:
    """JAX/Pallas port of the base Network with a concrete dense eps forward()."""

    # bf16 W buffer budget: double/triple-buffered tiles stay well inside
    # v7x's 64 MiB physical VMEM and are tiny vs. v5e/v6e's 128 MiB.
    W_VMEM_BUDGET = 16 * 1024 * 1024

    def __init__(self, alphas_cumprod, weight, bias):
        # register_buffer('alphas_cumprod', alphas_cumprod.clip(1e-6, 1))
        self.alphas_cumprod = jnp.clip(alphas_cumprod, 1e-6, 1.0).astype(jnp.float32)
        self.timesteps = None  # set via set_sampling_parameters

        D = weight.shape[0]
        self.D = D
        # Pad D up to a lane-friendly multiple of 256 so the tiled path is
        # ALWAYS taken (no full-D W fallback) and nb=2 splits cleanly.
        Dp = max(256, _round_up(D, 256))
        self.Dp = Dp

        # bf16 weights halve the HBM bytes of the roofline bottleneck; the MXU
        # still accumulates in f32 (intentional precision choice).
        self.weight = weight.astype(jnp.bfloat16)      # (D, D), for forward()
        self.bias = bias.astype(jnp.float32)           # (D,)
        w_pad = jnp.zeros((Dp, Dp), jnp.float32).at[:D, :D].set(
            weight.astype(jnp.float32))
        b_pad = jnp.zeros((Dp,), jnp.float32).at[:D].set(bias.astype(jnp.float32))
        self._w_pad = w_pad.astype(jnp.bfloat16)       # (Dp, Dp) kernel weight
        self._b_pad = b_pad.reshape(1, Dp)             # (1, Dp)  kernel bias

        self._batch_size = None
        self._num_sampling_steps = None
        self._num_reconstructions = None
        self._cache = None  # one-entry (x, t) -> (x0, score) memo

    # ---- sampling parameters ----
    def set_sampling_parameters(self, num_sampling_steps, batch_size=1,
                                num_reconstructions=1):
        self._batch_size = batch_size
        self._num_sampling_steps = num_sampling_steps
        self._num_reconstructions = num_reconstructions
        T = self.alphas_cumprod.shape[0]
        # Ascending schedule: timesteps[0] indexes the LARGEST alphas_cumprod,
        # so acp_t = acp[t] / acp[timesteps[0]] <= 1 and sqrt(1 - acp_t) stays
        # real for every queried t.
        self.timesteps = jnp.linspace(0, T - 1, num_sampling_steps).astype(jnp.int32)

    def clear_sampling_parameters(self):
        self._batch_size = None
        self._num_sampling_steps = None
        self._num_reconstructions = None
        self._cache = None

    def set_condition(self, condition=None):
        # TODO(synk): conditioning is a no-op in the abstract base class.
        pass

    def clear_condition(self):
        pass

    # ---- diffusion scalar glue (tiny, hoisted off the kernel's VALU path) ----
    def _coefs(self, t):
        t = jnp.asarray(t, dtype=jnp.int32)
        t0 = self.timesteps[0].astype(jnp.int32)
        acp_t = self.alphas_cumprod[t] / self.alphas_cumprod[t0]
        sqrt_acp = jnp.sqrt(acp_t)
        # NOTE: at t == timesteps[0], acp_t == 1 so score = -eps/0 -> inf, same
        # as the PyTorch reference formula.
        sqrt_om = jnp.sqrt(1.0 - acp_t)
        return jnp.stack([1.0 / sqrt_acp,
                          sqrt_om / sqrt_acp,
                          -1.0 / sqrt_om]).astype(jnp.float32)

    # ---- fused kernel: both outputs from ONE weight pass ----
    def predict_x0_and_score(self, x_nchw, t):
        B, C, H, W = x_nchw.shape
        D = C * H * W
        assert D == self.D, "input feature size must match the network"
        Dp = self.Dp

        x2d = x_nchw.reshape(B, D).astype(jnp.float32)
        # Pad batch (sublane) dim to a multiple of 8 and features to Dp;
        # padded rows/cols are discarded after the kernel.
        B_pad = max(8, _round_up(B, 8))
        x2d = jnp.pad(x2d, ((0, B_pad - B), (0, Dp - D)))
        coefs = self._coefs(t)

        tn, tk, nb, kb = _choose_tiles(Dp, self.W_VMEM_BUDGET)

        # Depth-3 buffering on the W stream only when the K loop is long.
        if kb >= 4:
            w_bufs = 3
            w_spec = pl.BlockSpec((tk, tn), lambda n, k: (k, n),
                                  pipeline_mode=pl.Buffered(3))
        else:
            w_bufs = 2
            w_spec = pl.BlockSpec((tk, tn), lambda n, k: (k, n))

        # VMEM limit from the actual buffer math (+ headroom), not a fixed cap.
        vmem_bytes = (w_bufs * tk * tn * 2          # W tiles (bf16)
                      + 2 * B_pad * Dp * 4          # resident x block (f32)
                      + 2 * 8 * tn * 4              # bias (sublane-padded)
                      + 2 * 2 * B_pad * tn * 4)     # x0 + score blocks
        vmem_limit = int(vmem_bytes * 1.5) + (4 << 20)
        vmem_limit = max(16 << 20, min(vmem_limit, 56 << 20))

        flops = 2 * B_pad * Dp * Dp
        bytes_accessed = (Dp * Dp * 2               # W (bf16)
                          + B_pad * Dp * 4          # x (f32, once)
                          + Dp * 4                  # bias
                          + 2 * B_pad * Dp * 4)     # x0 + score outputs

        x0, score = pl.pallas_call(
            _network_kernel,
            out_shape=(jax.ShapeDtypeStruct((B_pad, Dp), jnp.float32),
                       jax.ShapeDtypeStruct((B_pad, Dp), jnp.float32)),
            grid=(nb, kb),
            in_specs=[
                pl.BlockSpec(memory_space=pltpu.MemorySpace.SMEM),   # coefs
                pl.BlockSpec((B_pad, Dp), lambda n, k: (0, 0)),      # x (one f32 copy)
                w_spec,                                              # W
                pl.BlockSpec((1, tn), lambda n, k: (0, n)),          # bias
            ],
            out_specs=(
                pl.BlockSpec((B_pad, tn), lambda n, k: (0, n)),      # x0
                pl.BlockSpec((B_pad, tn), lambda n, k: (0, n)),      # score (acc)
            ),
            compiler_params=pltpu.CompilerParams(
                dimension_semantics=("parallel", "arbitrary"),
                vmem_limit_bytes=vmem_limit,
            ),
            cost_estimate=pl.CostEstimate(
                flops=flops, transcendentals=0, bytes_accessed=bytes_accessed),
        )(coefs, x2d, self._w_pad, self._b_pad)

        x0 = x0[:B, :D].reshape(B, C, H, W)
        score = score[:B, :D].reshape(B, C, H, W)
        return x0, score

    # ---- public API mirroring the torch module ----
    def _x0_and_score(self, x_nchw, t):
        # One-entry memo so predict_x0() + score() on the same (x, t) only run
        # the fused kernel once.  NOTE: identity check is only reliable eagerly.
        if isinstance(t, int) and self._cache is not None:
            cx, ct, out = self._cache
            if cx is x_nchw and ct == t:
                return out
        out = self.predict_x0_and_score(x_nchw, t)
        if isinstance(t, int):
            self._cache = (x_nchw, t, out)
        return out

    def predict_x0(self, x_nchw, t):
        return self._x0_and_score(x_nchw, t)[0]

    def score(self, x_nchw, t):
        return self._x0_and_score(x_nchw, t)[1]

    def forward(self, x_nchw, t):
        # Stand-in dense eps network (same bf16 / f32-accumulation precision as
        # the Pallas kernel so reference checks compare like-for-like).
        B, C, H, W = x_nchw.shape
        D = C * H * W
        x2d = x_nchw.reshape(B, D).astype(jnp.bfloat16)
        eps = jnp.dot(x2d, self.weight,
                      preferred_element_type=jnp.float32) + self.bias
        return eps.reshape(B, C, H, W)


def _reference(net, x_nchw, t):
    """Pure-JAX reference of the base-class formulas (same precision path)."""
    acp_t = net.alphas_cumprod[t] / net.alphas_cumprod[net.timesteps[0]]
    eps = net.forward(x_nchw, t)
    x0 = (x_nchw - jnp.sqrt(1.0 - acp_t) * eps) / jnp.sqrt(acp_t)
    score = -eps / jnp.sqrt(1.0 - acp_t)
    return x0, score


if __name__ == "__main__":
    key = jax.random.PRNGKey(0)
    k_x, k_w, k_b = jax.random.split(key, 3)

    # small shapes: batch=2, channels=4, spatial=16x16  ->  D = 1024
    B, C, H, W = 2, 4, 16, 16
    D = C * H * W
    T = 50  # diffusion timesteps

    # deterministic diffusion schedule: alphas_cumprod from linear betas
    betas = jnp.linspace(1e-4, 2e-2, T, dtype=jnp.float32)
    alphas_cumprod = jnp.cumprod(1.0 - betas)

    # deterministic "eps network" parameters
    weight = jax.random.normal(k_w, (D, D), dtype=jnp.float32) * (1.0 / jnp.sqrt(D))
    bias = jax.random.normal(k_b, (D,), dtype=jnp.float32) * 0.01

    x = jax.random.normal(k_x, (B, C, H, W), dtype=jnp.float32)

    net = PallasNetwork(alphas_cumprod, weight, bias)
    net.set_sampling_parameters(num_sampling_steps=10, batch_size=B)

    t = 20  # query timestep (t > timesteps[0] == 0  ->  acp_t < 1, finite)
    x0, sc = net.predict_x0_and_score(x, t)   # single fused launch for both
    jax.block_until_ready((x0, sc))

    # sanity-check against pure-JAX reference of the base-class formulas
    x0_ref, sc_ref = _reference(net, x, t)
    assert bool(jnp.all(jnp.isfinite(x0))) and bool(jnp.all(jnp.isfinite(sc)))
    assert jnp.allclose(x0, x0_ref, atol=1e-2, rtol=1e-2), \
        float(jnp.max(jnp.abs(x0 - x0_ref)))
    assert jnp.allclose(sc, sc_ref, atol=1e-2, rtol=1e-2), \
        float(jnp.max(jnp.abs(sc - sc_ref)))

    print("KERNEL_OK")
</pallas_src>

<mosaic_0001>
module attributes {stable_mosaic.version = 11 : i64} {
  func.func @_network_kernel(%arg0: i32, %arg1: i32, %arg2: memref<3xf32, #tpu.memory_space<smem>>, %arg3: memref<8x1024xf32, #tpu.memory_space<vmem>>, %arg4: memref<1024x512xbf16, #tpu.memory_space<vmem>>, %arg5: memref<1x512xf32, #tpu.memory_space<vmem>>, %arg6: memref<8x512xf32, #tpu.memory_space<vmem>>, %arg7: memref<8x512xf32, #tpu.memory_space<vmem>>) attributes {dimension_semantics = [#tpu.dimension_semantics<parallel>, #tpu.dimension_semantics<arbitrary>], iteration_bounds = array<i64: 2, 1>, scalar_prefetch = 0 : i64, scratch_operands = 0 : i64, tpu.core_type = #tpu.core_type<tc>, window_params = [{transform_indices = @transform_0, window_bounds = array<i64: 3>}, {pipeline_mode = #tpu.pipeline_mode<synchronous>, transform_indices = @transform_1, window_bounds = array<i64: 8, 1024>}, {transform_indices = @transform_2, window_bounds = array<i64: 1024, 512>}, {transform_indices = @transform_3, window_bounds = array<i64: 1, 512>}, {transform_indices = @transform_4, window_bounds = array<i64: 8, 512>}, {transform_indices = @transform_5, window_bounds = array<i64: 8, 512>}]} {
    %c0_i32 = arith.constant 0 : i32
    %0 = arith.cmpi eq, %arg1, %c0_i32 : i32
    %1 = arith.extui %0 : i1 to i32
    %c0_i32_0 = arith.constant 0 : i32
    %2 = arith.cmpi ne, %1, %c0_i32_0 : i32
    scf.if %2 {
      %c0_9 = arith.constant 0 : index
      %c0_10 = arith.constant 0 : index
      %16 = vector.load %arg5[%c0_9, %c0_10] : memref<1x512xf32, #tpu.memory_space<vmem>>, vector<1x512xf32>
      %17 = vector.shape_cast %16 : vector<1x512xf32> to vector<1x512xf32>
      %18 = vector.broadcast %17 : vector<1x512xf32> to vector<8x512xf32>
      %c0_11 = arith.constant 0 : index
      %c0_12 = arith.constant 0 : index
      %19 = vector.load %arg7[%c0_11, %c0_12] : memref<8x512xf32, #tpu.memory_space<vmem>>, vector<8x512xf32>
      tpu.vector_store %arg7[%c0_11, %c0_12], %18 {strides = array<i32>} : memref<8x512xf32, #tpu.memory_space<vmem>>, vector<8x512xf32>,
    } else {
    }
    %c1024_i32 = arith.constant 1024 : i32
    %3 = arith.muli %arg1, %c1024_i32 : i32
    %4 = tpu.assume_multiple %3, 128 : i32
    %c0 = arith.constant 0 : index
    %5 = arith.index_cast %4 : i32 to index
    %6 = vector.load %arg3[%c0, %5] : memref<8x1024xf32, #tpu.memory_space<vmem>>, vector<8x1024xf32>
    %7 = arith.truncf %6 : vector<8x1024xf32> to vector<8x1024xbf16>
    %c0_1 = arith.constant 0 : index
    %c0_2 = arith.constant 0 : index
    %8 = vector.load %arg7[%c0_1, %c0_2] : memref<8x512xf32, #tpu.memory_space<vmem>>, vector<8x512xf32>
    %c0_3 = arith.constant 0 : index
    %c0_4 = arith.constant 0 : index
    %9 = vector.load %arg4[%c0_3, %c0_4] : memref<1024x512xbf16, #tpu.memory_space<vmem>>, vector<1024x512xbf16>
    %cst = arith.constant dense<0.000000e+00> : vector<8x512xf32>
    %10 = tpu.matmul %7, %9, %cst {dimension_numbers = #tpu.dot_dimension_numbers<[1], [0], [0], [1], [0, 0, 1, 1], [], []>} : vector<8x1024xbf16>, vector<1024x512xbf16>, vector<8x512xf32> -> vector<8x512xf32>
    %11 = arith.addf %8, %10 : vector<8x512xf32>
    %c0_5 = arith.constant 0 : index
    %c0_6 = arith.constant 0 : index
    %12 = vector.load %arg7[%c0_5, %c0_6] : memref<8x512xf32, #tpu.memory_space<vmem>>, vector<8x512xf32>
    tpu.vector_store %arg7[%c0_5, %c0_6], %11 {strides = array<i32>} : memref<8x512xf32, #tpu.memory_space<vmem>>, vector<8x512xf32>,
    %c0_i32_7 = arith.constant 0 : i32
    %13 = arith.cmpi eq, %arg1, %c0_i32_7 : i32
    %14 = arith.extui %13 : i1 to i32
    %c0_i32_8 = arith.constant 0 : i32
    %15 = arith.cmpi ne, %14, %c0_i32_8 : i32
    scf.if %15 {
      %c0_9 = arith.constant 0 : index
      %c0_10 = arith.constant 0 : index
      %16 = vector.load %arg7[%c0_9, %c0_10] : memref<8x512xf32, #tpu.memory_space<vmem>>, vector<8x512xf32>
      %c512_i32 = arith.constant 512 : i32
      %17 = arith.muli %arg0, %c512_i32 : i32
      %18 = tpu.assume_multiple %17, 128 : i32
      %c0_11 = arith.constant 0 : index
      %19 = arith.index_cast %18 : i32 to index
      %20 = vector.load %arg3[%c0_11, %19] : memref<8x1024xf32, #tpu.memory_space<vmem>>, vector<8x512xf32>
      %c0_12 = arith.constant 0 : index
      %21 = memref.load %arg2[%c0_12] : memref<3xf32, #tpu.memory_space<smem>>
      %22 = vector.broadcast %21 : f32 to vector<8x512xf32>
      %23 = arith.mulf %22, %20 : vector<8x512xf32>
      %c1 = arith.constant 1 : index
      %24 = memref.load %arg2[%c1] : memref<3xf32, #tpu.memory_space<smem>>
      %25 = vector.broadcast %24 : f32 to vector<8x512xf32>
      %26 = arith.mulf %25, %16 : vector<8x512xf32>
      %27 = arith.subf %23, %26 : vector<8x512xf32>
      %c0_13 = arith.constant 0 : index
      %c0_14 = arith.constant 0 : index
      %28 = vector.load %arg6[%c0_13, %c0_14] : memref<8x512xf32, #tpu.memory_space<vmem>>, vector<8x512xf32>
      tpu.vector_store %arg6[%c0_13, %c0_14], %27 {strides = array<i32>} : memref<8x512xf32, #tpu.memory_space<vmem>>, vector<8x512xf32>,
      %c2 = arith.constant 2 : index
      %29 = memref.load %arg2[%c2] : memref<3xf32, #tpu.memory_space<smem>>
      %30 = vector.broadcast %29 : f32 to vector<8x512xf32>
      %31 = arith.mulf %30, %16 : vector<8x512xf32>
      %c0_15 = arith.constant 0 : index
      %c0_16 = arith.constant 0 : index
      %32 = vector.load %arg7[%c0_15, %c0_16] : memref<8x512xf32, #tpu.memory_space<vmem>>, vector<8x512xf32>
      tpu.vector_store %arg7[%c0_15, %c0_16], %31 {strides = array<i32>} : memref<8x512xf32, #tpu.memory_space<vmem>>, vector<8x512xf32>,
    } else {
    }
    return
  }
  func.func @transform_0(%arg0: i32, %arg1: i32) -> i32 {
    %c0_i32 = arith.constant 0 : i32
    %c0_i32_0 = arith.constant 0 : i32
    return %c0_i32 : i32
  }
  func.func @transform_1(%arg0: i32, %arg1: i32) -> (i32, i32) {
    %c0_i32 = arith.constant 0 : i32
    %c0_i32_0 = arith.constant 0 : i32
    %c0_i32_1 = arith.constant 0 : i32
    return %c0_i32, %c0_i32_0 : i32, i32
  }
  func.func @transform_2(%arg0: i32, %arg1: i32) -> (i32, i32) {
    %c0_i32 = arith.constant 0 : i32
    return %arg1, %arg0 : i32, i32
  }
  func.func @transform_3(%arg0: i32, %arg1: i32) -> (i32, i32) {
    %c0_i32 = arith.constant 0 : i32
    %c0_i32_0 = arith.constant 0 : i32
    return %c0_i32, %arg0 : i32, i32
  }
  func.func @transform_4(%arg0: i32, %arg1: i32) -> (i32, i32) {
    %c0_i32 = arith.constant 0 : i32
    %c0_i32_0 = arith.constant 0 : i32
    return %c0_i32, %arg0 : i32, i32
  }
  func.func @transform_5(%arg0: i32, %arg1: i32) -> (i32, i32) {
    %c0_i32 = arith.constant 0 : i32
    %c0_i32_0 = arith.constant 0 : i32
    return %c0_i32, %arg0 : i32, i32
  }
}

</mosaic_0001>

<llo_original>
// kernel: tpu_custom_call.1
$region0: #{tpu_custom_call.1}
  #allocation0 [shape = 'u32[]', space=smem, size = 0x4, offset = 0x4, fixed_abs, tag = 'smem constant byte address 0x4 - core index']
  #allocation1 [shape = 'u32[144,128]{1,0:T(1,128)}', space=vmem, size = 0x12000, scoped, tag = 'internal scratch']
  %s0 = inlined_call_operand.hbm [shape: f32[3], index: 0, kind: input, shape index: {}]
  %s1 = inlined_call_operand.hbm [shape: f32[8,1024], index: 1, kind: input, shape index: {}]
  %s2 = inlined_call_operand.hbm [shape: bf16[1024,1024], index: 2, kind: input, shape index: {}]
  %s3 = inlined_call_operand.hbm [shape: f32[1,1024], index: 3, kind: input, shape index: {}]
  %s4 = inlined_call_operand.hbm [shape: f32[8,1024], index: 4, kind: output, shape index: {0}]
  %s5 = inlined_call_operand.hbm [shape: f32[8,1024], index: 5, kind: output, shape index: {1}]
  %6 = xla_tuple %s4, %s5
  %s7 = sld [smem:[#allocation0]]
  $region81: #{tpu_custom_call.1} parent=0
    _
  %s9 = ssub.s32 1, %s7
  %s10 = scalar_select 0, %s9, %s7
  $region1: #{tpu_custom_call.1} parent=0
    #allocation2 [shape = 'u8[512]{0}', space=smem, size = 0x200, scoped, tag = 'input window, operand 0, single buffered']
    #allocation3 [shape = 's32[2]{0}', space=sflag, size = 0x8, scoped, tag = 'scoped memory for tpu_custom_call.1']
    #allocation4 [shape = 's32[2]{0}', space=sflag, size = 0x8, scoped, tag = 'scoped memory for tpu_custom_call.1']
    #allocation5 [shape = 's32[2]{0}', space=sflag, size = 0x8, scoped, tag = 'scoped memory for tpu_custom_call.1']
    #allocation6 [shape = 'u8[32768]{0}', space=vmem, size = 0x8000, scoped, tag = 'input window, operand 1, single buffered']
    #allocation7 [shape = 'u8[2097152]{0}', space=vmem, size = 0x200000, scoped, tag = 'input window, operand 2']
    #allocation8 [shape = 's32[2]{0}', space=sflag, size = 0x8, scoped, tag = 'scoped memory for tpu_custom_call.1']
    #allocation9 [shape = 'u8[4096]{0}', space=vmem, size = 0x1000, scoped, tag = 'input window, operand 3']
    #allocation10 [shape = 'u8[32768]{0}', space=vmem, size = 0x8000, scoped, tag = 'output window, operand 0']
    #allocation11 [shape = 'u8[32768]{0}', space=vmem, size = 0x8000, scoped, tag = 'output window, operand 1']
    #allocation12 [shape = 's32[2]{0}', space=sflag, size = 0x8, scoped, tag = 'scoped memory for tpu_custom_call.1']
    %11 = vsyncpa [#allocation5], 0
    %12 = vsyncpa [#allocation3], 0
    %13 = vsyncpa [#allocation8], 0
    %s14 = scalar_lea.sflag [#allocation8], 1
    %15 = vsyncpa %s14, 0
    %16 = vsyncpa [#allocation4], 0
    %s17 = scalar_lea.sflag [#allocation4], 1
    %18 = vsyncpa %s17, 0
    %19 = vsyncpa [#allocation12], 0
    %s20 = scalar_lea.sflag [#allocation12], 1
    %21 = vsyncpa %s20, 0
    loop: start=0, step=1, limit=4
    $region2: #{tpu_custom_call.1} parent=1 // loop_pre_header
      _
    $region3: #{tpu_custom_call.1} parent=1 // loop_header
      %s23 = sphi 0, %s27
      %p24 = scmp.ge.s32.totalorder %s23, 4
      %s30 = sphi 0, %s42
      %s31 = sphi 0, %s38
      %s32 = sphi 0, %s30
      %s33 = sphi 0, %s31
      %s34 = sphi 0, %s32
      %s35 = sphi 0, %s33
      %s43 = sphi 0, %s43
      %s45 = sphi 0, %s43
      %s46 = sphi 0, %s45
      %s60 = sphi 0, %s46
      %s64 = sphi 0, %s64
      %s66 = sphi 0, %s64
      %s67 = sphi 0, %s66
      %s81 = sphi 0, %s67
      %s89 = sphi 0, %s91
      %s92 = sphi 0, %s89
      %s93 = sphi 0, %s92
      %s109 = sphi 0, %s93
      %s115 = sphi 0, %s117
      %s118 = sphi 0, %s115
      %s119 = sphi 0, %s118
      %s135 = sphi 0, %s119
      %s141 = sphi 0, %s143
      %s144 = sphi 0, %s141
      %s145 = sphi 0, %s144
      %s161 = sphi 0, %s145
      %s167 = sphi 0, %s169
      %s170 = sphi 0, %s167
      %s171 = sphi 0, %s170
      %s187 = sphi 0, %s171
    $region4: #{tpu_custom_call.1} parent=1 // loop_header_branch
      %26 = sbr.rel (%p24) target = $region8
    $region5: #{tpu_custom_call.1} parent=1 // loop_body
      %s28 = ssub.s32 %s23, 1
      %s29 = ssub.s32 %s23, 2
      %s36 = sadd.s32 1, %s31
      %p37 = scmp.ge.s32.totalorder %s36, 1
      %s38 = scalar_select %p37, 0, %s36
      %s39 = sadd.s32 1, %s30
      %s40 = scalar_select %p37, %s39, %s30
      %p41 = scmp.ge.s32.totalorder %s40, 2
      %s42 = scalar_select %p41, 0, %s40
      %s44 = sadd.s32 %s43, 1
      %p47 = scmp.eq.s32.totalorder %s23, 1
      %p48 = scmp.ne.s32.totalorder %s43, %s45
      %p49 = scmp.eq.s32.totalorder %s23, 0
      %p50 = por %p48, %p49
      %p51 = scmp.ne.s32.totalorder %s43, %s45
      %p52 = scmp.eq.s32.totalorder %s28, 1
      %p53 = por %p51, %p52
      %p54 = scmp.ne.s32.totalorder %s45, %s46
      %p55 = scmp.eq.s32.totalorder %s28, 0
      %p56 = por %p54, %p55
      %p57 = scmp.ne.s32.totalorder %s45, %s46
      %p58 = scmp.eq.s32.totalorder %s29, 1
      %p59 = por %p57, %p58
      %p61 = scmp.ne.s32.totalorder %s46, %s60
      %p62 = scmp.eq.s32.totalorder %s29, 0
      %p63 = por %p61, %p62
      %s65 = sadd.s32 %s64, 1
      %p68 = scmp.eq.s32.totalorder %s23, 1
      %p69 = scmp.ne.s32.totalorder %s64, %s66
      %p70 = scmp.eq.s32.totalorder %s23, 0
      %p71 = por %p69, %p70
      %p72 = scmp.ne.s32.totalorder %s64, %s66
      %p73 = scmp.eq.s32.totalorder %s28, 1
      %p74 = por %p72, %p73
      %p75 = scmp.ne.s32.totalorder %s66, %s67
      %p76 = scmp.eq.s32.totalorder %s28, 0
      %p77 = por %p75, %p76
      %p78 = scmp.ne.s32.totalorder %s66, %s67
      %p79 = scmp.eq.s32.totalorder %s29, 1
      %p80 = por %p78, %p79
      %p82 = scmp.ne.s32.totalorder %s67, %s81
      %p83 = scmp.eq.s32.totalorder %s29, 0
      %p84 = por %p82, %p83
      %s85 = ssub.s32 %s31, %s38
      %s86 = ssub.s32 %s30, %s42
      %s87 = sor.u32 %s85, %s86
      %p88 = scmp.eq.s32.totalorder %s87, 0
      %s90 = sadd.s32 %s89, 1
      %s91 = scalar_select %p88, %s89, %s90
      %p94 = pneg %p88
      %p95 = scmp.eq.s32.totalorder %s23, 1
      %p96 = por %p94, %p95
      %p97 = scmp.ne.s32.totalorder %s89, %s92
      %p98 = scmp.eq.s32.totalorder %s23, 0
      %p99 = por %p97, %p98
      %p100 = scmp.ne.s32.totalorder %s89, %s92
      %p101 = scmp.eq.s32.totalorder %s28, 1
      %p102 = por %p100, %p101
      %p103 = scmp.ne.s32.totalorder %s92, %s93
      %p104 = scmp.eq.s32.totalorder %s28, 0
      %p105 = por %p103, %p104
      %p106 = scmp.ne.s32.totalorder %s92, %s93
      %p107 = scmp.eq.s32.totalorder %s29, 1
      %p108 = por %p106, %p107
      %p110 = scmp.ne.s32.totalorder %s93, %s109
      %p111 = scmp.eq.s32.totalorder %s29, 0
      %p112 = por %p110, %p111
      %s113 = ssub.s32 %s30, %s42
      %p114 = scmp.eq.s32.totalorder %s113, 0
      %s116 = sadd.s32 %s115, 1
      %s117 = scalar_select %p114, %s115, %s116
      %p120 = pneg %p114
      %p121 = scmp.eq.s32.totalorder %s23, 1
      %p122 = por %p120, %p121
      %p123 = scmp.ne.s32.totalorder %s115, %s118
      %p124 = scmp.eq.s32.totalorder %s23, 0
      %p125 = por %p123, %p124
      %p126 = scmp.ne.s32.totalorder %s115, %s118
      %p127 = scmp.eq.s32.totalorder %s28, 1
      %p128 = por %p126, %p127
      %p129 = scmp.ne.s32.totalorder %s118, %s119
      %p130 = scmp.eq.s32.totalorder %s28, 0
      %p131 = por %p129, %p130
      %p132 = scmp.ne.s32.totalorder %s118, %s119
      %p133 = scmp.eq.s32.totalorder %s29, 1
      %p134 = por %p132, %p133
      %p136 = scmp.ne.s32.totalorder %s119, %s135
      %p137 = scmp.eq.s32.totalorder %s29, 0
      %p138 = por %p136, %p137
      %s139 = ssub.s32 %s30, %s42
      %p140 = scmp.eq.s32.totalorder %s139, 0
      %s142 = sadd.s32 %s141, 1
      %s143 = scalar_select %p140, %s141, %s142
      %p146 = pneg %p140
      %p147 = scmp.eq.s32.totalorder %s23, 1
      %p148 = por %p146, %p147
      %p149 = scmp.ne.s32.totalorder %s141, %s144
      %p150 = scmp.eq.s32.totalorder %s23, 0
      %p151 = por %p149, %p150
      %p152 = scmp.ne.s32.totalorder %s141, %s144
      %p153 = scmp.eq.s32.totalorder %s28, 1
      %p154 = por %p152, %p153
      %p155 = scmp.ne.s32.totalorder %s144, %s145
      %p156 = scmp.eq.s32.totalorder %s28, 0
      %p157 = por %p155, %p156
      %p158 = scmp.ne.s32.totalorder %s144, %s145
      %p159 = scmp.eq.s32.totalorder %s29, 1
      %p160 = por %p158, %p159
      %p162 = scmp.ne.s32.totalorder %s145, %s161
      %p163 = scmp.eq.s32.totalorder %s29, 0
      %p164 = por %p162, %p163
      %s165 = ssub.s32 %s30, %s42
      %p166 = scmp.eq.s32.totalorder %s165, 0
      %s168 = sadd.s32 %s167, 1
      %s169 = scalar_select %p166, %s167, %s168
      %p172 = pneg %p166
      %p173 = scmp.eq.s32.totalorder %s23, 1
      %p174 = por %p172, %p173
      %p175 = scmp.ne.s32.totalorder %s167, %s170
      %p176 = scmp.eq.s32.totalorder %s23, 0
      %p177 = por %p175, %p176
      %p178 = scmp.ne.s32.totalorder %s167, %s170
      %p179 = scmp.eq.s32.totalorder %s28, 1
      %p180 = por %p178, %p179
      %p181 = scmp.ne.s32.totalorder %s170, %s171
      %p182 = scmp.eq.s32.totalorder %s28, 0
      %p183 = por %p181, %p182
      %p184 = scmp.ne.s32.totalorder %s170, %s171
      %p185 = scmp.eq.s32.totalorder %s29, 1
      %p186 = por %p184, %p185
      %p188 = scmp.ne.s32.totalorder %s171, %s187
      %p189 = scmp.eq.s32.totalorder %s29, 0
      %p190 = por %p188, %p189
      %p191 = scmp.le.s32.totalorder 1, %s23
      %p192 = scmp.lt.s32.totalorder %s23, 3
      %p193 = pnand %p191, %p192
      %p194 = pneg %p193
      // Predicated region
      $region9: #{tpu_custom_call.1} parent=5 // pred_check
        _
      $region10: #{tpu_custom_call.1} parent=5 // pred_check_branch
        %196 = sbr.rel (%p193) target = $region12
      $region11: #{tpu_custom_call.1} parent=5 // pred_region
        %s197 = ssub.s32 %s23, 1
        // Predicated region
        $region13: #{tpu_custom_call.1} parent=11 // pred_check
          %p198 = pneg %p56
        $region14: #{tpu_custom_call.1} parent=11 // pred_check_branch
          %200 = sbr.rel (%p198) target = $region16
        $region15: #{tpu_custom_call.1} parent=11 // pred_region
          %s202 = ssub.s32 16, 16
          %203 = vsyncadd [#allocation5], %s202
          %206 = dma.hbm_to_smem %s0, 16, [#allocation2], [#allocation5]
        $region16: #{tpu_custom_call.1} parent=11 // pred_fallthru
          _
        // Predicated region
        $region17: #{tpu_custom_call.1} parent=11 // pred_check
          %p207 = pneg %p77
        $region18: #{tpu_custom_call.1} parent=11 // pred_check_branch
          %209 = sbr.rel (%p207) target = $region20
        $region19: #{tpu_custom_call.1} parent=11 // pred_region
          %s211 = ssub.s32 1024, 1024
          %212 = vsyncadd [#allocation3], %s211
          %s214 = sshll.u32 [#allocation6], 4
          %s215 = int_to_ptr.vmem [resolvable:$true] %s214
          %217 = dma.hbm_to_vmem [thread:$0]  %s1, 1024, %s215, [#allocation3]
        $region20: #{tpu_custom_call.1} parent=11 // pred_fallthru
          _
      $region12: #{tpu_custom_call.1} parent=5 // pred_fallthru
        _
      %p218 = scmp.lt.s32.totalorder %s23, 2
      // Predicated region
      $region21: #{tpu_custom_call.1} parent=5 // pred_check
        %p219 = pneg %p218
      $region22: #{tpu_custom_call.1} parent=5 // pred_check_branch
        %221 = sbr.rel (%p219) target = $region24
      $region23: #{tpu_custom_call.1} parent=5 // pred_region
        // Predicated region
        $region25: #{tpu_custom_call.1} parent=23 // pred_check
          %p222 = pneg %p99
        $region26: #{tpu_custom_call.1} parent=23 // pred_check_branch
          %224 = sbr.rel (%p222) target = $region28
        $region27: #{tpu_custom_call.1} parent=23 // pred_region
          %s225 = sand.u32 %s23, 1
          %s226 = scalar_lea.sflag [#allocation8], %s225
          %s227 = sand.u32 %s89, 1
          %s228 = smul.addr %s227, 2048
          %s229 = scalar_lea.vmem [#allocation7], %s228
          %s230 = smul.u32 128, %s31
          %s231 = smul.u32 4, %s30
          %s233 = ssub.s32 32768, 32768
          %234 = vsyncadd %s226, %s233
          %s235 = smul.addr %s230, 8
          %s236 = sadd.s32 %s231, %s235
          %s237 = smul.addr %s236, 64
          %s238 = scalar_lea.hbm %s2, %s237
          %s239 = sshll.u32 %s229, 4
          %s240 = int_to_ptr.vmem [resolvable:$true] %s239
          %245 = dma.hbm_to_vmem [thread:$0]  %s238, 32768, %s240, %s226, 512, 256, 16
        $region28: #{tpu_custom_call.1} parent=23 // pred_fallthru
          _
        // Predicated region
        $region29: #{tpu_custom_call.1} parent=23 // pred_check
          %p246 = pneg %p125
        $region30: #{tpu_custom_call.1} parent=23 // pred_check_branch
          %248 = sbr.rel (%p246) target = $region32
        $region31: #{tpu_custom_call.1} parent=23 // pred_region
          %s249 = sand.u32 %s23, 1
          %s250 = scalar_lea.sflag [#allocation8], %s249
          %s251 = sand.u32 %s115, 1
          %s252 = smul.addr %s251, 4
          %s253 = scalar_lea.vmem [#allocation9], %s252
          %s254 = smul.u32 4, %s30
          %s256 = ssub.s32 64, 64
          %257 = vsyncadd %s250, %s256
          %s258 = smul.addr %s254, 16
          %s259 = scalar_lea.hbm %s3, %s258
          %s261 = sshll.u32 %s253, 4
          %s262 = int_to_ptr.vmem [resolvable:$true] %s261
          %264 = dma.hbm_to_vmem [thread:$0]  %s259, 64, %s262, %s250
        $region32: #{tpu_custom_call.1} parent=23 // pred_fallthru
          _
      $region24: #{tpu_custom_call.1} parent=5 // pred_fallthru
        _
      %p265 = scmp.le.s32.totalorder 1, %s23
      %p266 = scmp.lt.s32.totalorder %s23, 3
      %p267 = pnand %p265, %p266
      %p268 = pneg %p267
      // Predicated region
      $region33: #{tpu_custom_call.1} parent=5 // pred_check
        _
      $region34: #{tpu_custom_call.1} parent=5 // pred_check_branch
        %270 = sbr.rel (%p267) target = $region36
      $region35: #{tpu_custom_call.1} parent=5 // pred_region
        %s271 = ssub.s32 %s23, 1
        // Predicated region
        $region37: #{tpu_custom_call.1} parent=35 // pred_check
          %p272 = pneg %p56
        $region38: #{tpu_custom_call.1} parent=35 // pred_check_branch
          %274 = sbr.rel (%p272) target = $region40
        $region39: #{tpu_custom_call.1} parent=35 // pred_region
          %275 = dma.done [#allocation5], 16
        $region40: #{tpu_custom_call.1} parent=35 // pred_fallthru
          _
        // Predicated region
        $region41: #{tpu_custom_call.1} parent=35 // pred_check
          %p276 = pneg %p77
        $region42: #{tpu_custom_call.1} parent=35 // pred_check_branch
          %278 = sbr.rel (%p276) target = $region44
        $region43: #{tpu_custom_call.1} parent=35 // pred_region
          %279 = dma.done [#allocation3], 1024
        $region44: #{tpu_custom_call.1} parent=35 // pred_fallthru
          _
        %s280 = sand.u32 %s28, 1
        %s281 = scalar_lea.sflag [#allocation8], %s280
        %s282 = sand.u32 %s92, 1
        %s283 = smul.addr %s282, 2048
        %s284 = scalar_lea.vmem [#allocation7], %s283
        // Predicated region
        $region45: #{tpu_custom_call.1} parent=35 // pred_check
          %p285 = pneg %p105
        $region46: #{tpu_custom_call.1} parent=35 // pred_check_branch
          %287 = sbr.rel (%p285) target = $region48
        $region47: #{tpu_custom_call.1} parent=35 // pred_region
          %288 = dma.done %s281, 32768
        $region48: #{tpu_custom_call.1} parent=35 // pred_fallthru
          _
        %s289 = sand.u32 %s28, 1
        %s290 = scalar_lea.sflag [#allocation8], %s289
        %s291 = sand.u32 %s118, 1
        %s292 = smul.addr %s291, 4
        %s293 = scalar_lea.vmem [#allocation9], %s292
        // Predicated region
        $region49: #{tpu_custom_call.1} parent=35 // pred_check
          %p294 = pneg %p131
        $region50: #{tpu_custom_call.1} parent=35 // pred_check_branch
          %296 = sbr.rel (%p294) target = $region52
        $region51: #{tpu_custom_call.1} parent=35 // pred_region
          %297 = dma.done %s290, 64
        $region52: #{tpu_custom_call.1} parent=35 // pred_fallthru
          _
        %298 = sfence
        %p299 = pneg %p56
        %p300 = pneg %p53
        %p301 = pneg %p77
        %p302 = pneg %p74
        %s303 = sand.u32 %s28, 1
        %s304 = scalar_lea.sflag [#allocation8], %s303
        %s305 = sand.u32 %s92, 1
        %s306 = smul.addr %s305, 2048
        %s307 = scalar_lea.vmem [#allocation7], %s306
        %p308 = pneg %p105
        %p309 = pneg %p102
        %s310 = sand.u32 %s28, 1
        %s311 = scalar_lea.sflag [#allocation8], %s310
        %s312 = sand.u32 %s118, 1
        %s313 = smul.addr %s312, 4
        %s314 = scalar_lea.vmem [#allocation9], %s313
        %p315 = pneg %p131
        %p316 = pneg %p128
        %p317 = pneg %p157
        %p318 = pneg %p154
        %s319 = sand.u32 %s144, 1
        %s320 = scalar_lea.sflag [#allocation4], %s319
        %s321 = sand.u32 %s144, 1
        %s322 = smul.addr %s321, 32
        %s323 = scalar_lea.vmem [#allocation10], %s322
        %p324 = pneg %p183
        %p325 = pneg %p180
        %s326 = sand.u32 %s170, 1
        %s327 = scalar_lea.sflag [#allocation12], %s326
        %s328 = sand.u32 %s170, 1
        %s329 = smul.addr %s328, 32
        %s330 = scalar_lea.vmem [#allocation11], %s329
        %s331 = smul.u32 128, %s33
        %s332 = smul.u32 4, %s32
        %s333 = smul.u32 4, %s32
        %s334 = smul.u32 4, %s32
        %s335 = smul.u32 4, %s32
        %p336 = scmp.eq.s32.totalorder %s33, 0
        // Predicated region
        $region53: #{tpu_custom_call.1} parent=35 // pred_check
          %p337 = pneg %p336
        $region54: #{tpu_custom_call.1} parent=35 // pred_check_branch
          %339 = sbr.rel (%p337) target = $region56
        $region55: #{tpu_custom_call.1} parent=35 // pred_region
          %v340 = vld [vmem:[%s293] sm:$0xf]
          %v342 = vlaneseq
          %v343 = vshrl.u32 %v342, 7
          %v344 = vsub.s32 0, %v343
          %v345 = vrot.slane %v340, %v344
          %v346 = vlaneseq
          %v347 = vshrl.u32 %v346, 7
          %v348 = vsub.s32 1, %v347
          %v349 = vrot.slane %v340, %v348
          %v350 = vlaneseq
          %v351 = vshrl.u32 %v350, 7
          %v352 = vsub.s32 2, %v351
          %v353 = vrot.slane %v340, %v352
          %v354 = vlaneseq
          %v355 = vshrl.u32 %v354, 7
          %v356 = vsub.s32 3, %v355
          %v357 = vrot.slane %v340, %v356
          %362 = vst [vmem:[%s330] sm:$0xff] %v345
          %363 = vst [vmem:[%s330 + $0x8] sm:$0xff] %v349
          %364 = vst [vmem:[%s330 + $0x10] sm:$0xff] %v353
          %365 = vst [vmem:[%s330 + $0x18] sm:$0xff] %v357
        $region56: #{tpu_custom_call.1} parent=35 // pred_fallthru
          _
        %s366 = smul.u32 %s33, 1024
        %s367 = sshra.s32 %s366, 7
        %s368 = sand.u32 %s366, 127
        %s369 = smul.addr %s367, 8
        %s370 = scalar_lea.vmem [#allocation6], %s369
        %v371 = vld [vmem:[%s370] sm:$0xff]
        %v372 = vld [vmem:[%s370 + $0x8] sm:$0xff]
        %v373 = vld [vmem:[%s370 + $0x10] sm:$0xff]
        %v374 = vld [vmem:[%s370 + $0x18] sm:$0xff]
        %v375 = vld [vmem:[%s370 + $0x20] sm:$0xff]
        %v376 = vld [vmem:[%s370 + $0x28] sm:$0xff]
        %v377 = vld [vmem:[%s370 + $0x30] sm:$0xff]
        %v378 = vld [vmem:[%s370 + $0x38] sm:$0xff]
        %v379 = vpack.c.bf16 %v371, %v371
        %v380 = vpack.c.bf16 %v372, %v372
        %v381 = vpack.c.bf16 %v373, %v373
        %v382 = vpack.c.bf16 %v374, %v374
        %v383 = vpack.c.bf16 %v375, %v375
        %v384 = vpack.c.bf16 %v376, %v376
        %v385 = vpack.c.bf16 %v377, %v377
        %v386 = vpack.c.bf16 %v378, %v378
        %v387 = vld [vmem:[%s330] sm:$0xff]
        %v388 = vld [vmem:[%s330 + $0x8] sm:$0xff]
        %v389 = vld [vmem:[%s330 + $0x10] sm:$0xff]
        %v390 = vld [vmem:[%s330 + $0x18] sm:$0xff]
        %v391 = vld [vmem:[%s284] sm:$0xff]
        %v392 = vld [vmem:[%s284 + $0x8] sm:$0xff]
        %v393 = vld [vmem:[%s284 + $0x10] sm:$0xff]
        %v394 = vld [vmem:[%s284 + $0x18] sm:$0xff]
        %v395 = vld [vmem:[%s284 + $0x20] sm:$0xff]
        %v396 = vld [vmem:[%s284 + $0x28] sm:$0xff]
        %v397 = vld [vmem:[%s284 + $0x30] sm:$0xff]
        %v398 = vld [vmem:[%s284 + $0x38] sm:$0xff]
        %v399 = vld [vmem:[%s284 + $0x40] sm:$0xff]
        %v400 = vld [vmem:[%s284 + $0x48] sm:$0xff]
        %v401 = vld [vmem:[%s284 + $0x50] sm:$0xff]
        %v402 = vld [vmem:[%s284 + $0x58] sm:$0xff]
        %v403 = vld [vmem:[%s284 + $0x60] sm:$0xff]
        %v404 = vld [vmem:[%s284 + $0x68] sm:$0xff]
        %v405 = vld [vmem:[%s284 + $0x70] sm:$0xff]
        %v406 = vld [vmem:[%s284 + $0x78] sm:$0xff]
        %v407 = vld [vmem:[%s284 + $0x80] sm:$0xff]
        %v408 = vld [vmem:[%s284 + $0x88] sm:$0xff]
        %v409 = vld [vmem:[%s284 + $0x90] sm:$0xff]
        %v410 = vld [vmem:[%s284 + $0x98] sm:$0xff]
        %v411 = vld [vmem:[%s284 + $0xa0] sm:$0xff]
        %v412 = vld [vmem:[%s284 + $0xa8] sm:$0xff]
        %v413 = vld [vmem:[%s284 + $0xb0] sm:$0xff]
        %v414 = vld [vmem:[%s284 + $0xb8] sm:$0xff]
        %v415 = vld [vmem:[%s284 + $0xc0] sm:$0xff]
        %v416 = vld [vmem:[%s284 + $0xc8] sm:$0xff]
        %v417 = vld [vmem:[%s284 + $0xd0] sm:$0xff]
        %v418 = vld [vmem:[%s284 + $0xd8] sm:$0xff]
        %v419 = vld [vmem:[%s284 + $0xe0] sm:$0xff]
        %v420 = vld [vmem:[%s284 + $0xe8] sm:$0xff]
        %v421 = vld [vmem:[%s284 + $0xf0] sm:$0xff]
        %v422 = vld [vmem:[%s284 + $0xf8] sm:$0xff]
        %v423 = vld [vmem:[%s284 + $0x100] sm:$0xff]
        %v424 = vld [vmem:[%s284 + $0x108] sm:$0xff]
        %v425 = vld [vmem:[%s284 + $0x110] sm:$0xff]
        %v426 = vld [vmem:[%s284 + $0x118] sm:$0xff]
        %v427 = vld [vmem:[%s284 + $0x120] sm:$0xff]
        %v428 = vld [vmem:[%s284 + $0x128] sm:$0xff]
        %v429 = vld [vmem:[%s284 + $0x130] sm:$0xff]
        %v430 = vld [vmem:[%s284 + $0x138] sm:$0xff]
        %v431 = vld [vmem:[%s284 + $0x140] sm:$0xff]
        %v432 = vld [vmem:[%s284 + $0x148] sm:$0xff]
        %v433 = vld [vmem:[%s284 + $0x150] sm:$0xff]
        %v434 = vld [vmem:[%s284 + $0x158] sm:$0xff]
        %v435 = vld [vmem:[%s284 + $0x160] sm:$0xff]
        %v436 = vld [vmem:[%s284 + $0x168] sm:$0xff]
        %v437 = vld [vmem:[%s284 + $0x170] sm:$0xff]
        %v438 = vld [vmem:[%s284 + $0x178] sm:$0xff]
        %v439 = vld [vmem:[%s284 + $0x180] sm:$0xff]
        %v440 = vld [vmem:[%s284 + $0x188] sm:$0xff]
        %v441 = vld [vmem:[%s284 + $0x190] sm:$0xff]
        %v442 = vld [vmem:[%s284 + $0x198] sm:$0xff]
        %v443 = vld [vmem:[%s284 + $0x1a0] sm:$0xff]
        %v444 = vld [vmem:[%s284 + $0x1a8] sm:$0xff]
        %v445 = vld [vmem:[%s284 + $0x1b0] sm:$0xff]
        %v446 = vld [vmem:[%s284 + $0x1b8] sm:$0xff]
        %v447 = vld [vmem:[%s284 + $0x1c0] sm:$0xff]
        %v448 = vld [vmem:[%s284 + $0x1c8] sm:$0xff]
        %v449 = vld [vmem:[%s284 + $0x1d0] sm:$0xff]
        %v450 = vld [vmem:[%s284 + $0x1d8] sm:$0xff]
        %v451 = vld [vmem:[%s284 + $0x1e0] sm:$0xff]
        %v452 = vld [vmem:[%s284 + $0x1e8] sm:$0xff]
        %v453 = vld [vmem:[%s284 + $0x1f0] sm:$0xff]
        %v454 = vld [vmem:[%s284 + $0x1f8] sm:$0xff]
        %v455 = vld [vmem:[%s284 + $0x200] sm:$0xff]
        %v456 = vld [vmem:[%s284 + $0x208] sm:$0xff]
        %v457 = vld [vmem:[%s284 + $0x210] sm:$0xff]
        %v458 = vld [vmem:[%s284 + $0x218] sm:$0xff]
        %v459 = vld [vmem:[%s284 + $0x220] sm:$0xff]
        %v460 = vld [vmem:[%s284 + $0x228] sm:$0xff]
        %v461 = vld [vmem:[%s284 + $0x230] sm:$0xff]
        %v462 = vld [vmem:[%s284 + $0x238] sm:$0xff]
        %v463 = vld [vmem:[%s284 + $0x240] sm:$0xff]
        %v464 = vld [vmem:[%s284 + $0x248] sm:$0xff]
        %v465 = vld [vmem:[%s284 + $0x250] sm:$0xff]
        %v466 = vld [vmem:[%s284 + $0x258] sm:$0xff]
        %v467 = vld [vmem:[%s284 + $0x260] sm:$0xff]
        %v468 = vld [vmem:[%s284 + $0x268] sm:$0xff]
        %v469 = vld [vmem:[%s284 + $0x270] sm:$0xff]
        %v470 = vld [vmem:[%s284 + $0x278] sm:$0xff]
        %v471 = vld [vmem:[%s284 + $0x280] sm:$0xff]
        %v472 = vld [vmem:[%s284 + $0x288] sm:$0xff]
        %v473 = vld [vmem:[%s284 + $0x290] sm:$0xff]
        %v474 = vld [vmem:[%s284 + $0x298] sm:$0xff]
        %v475 = vld [vmem:[%s284 + $0x2a0] sm:$0xff]
        %v476 = vld [vmem:[%s284 + $0x2a8] sm:$0xff]
        %v477 = vld [vmem:[%s284 + $0x2b0] sm:$0xff]
        %v478 = vld [vmem:[%s284 + $0x2b8] sm:$0xff]
        %v479 = vld [vmem:[%s284 + $0x2c0] sm:$0xff]
        %v480 = vld [vmem:[%s284 + $0x2c8] sm:$0xff]
        %v481 = vld [vmem:[%s284 + $0x2d0] sm:$0xff]
        %v482 = vld [vmem:[%s284 + $0x2d8] sm:$0xff]
        %v483 = vld [vmem:[%s284 + $0x2e0] sm:$0xff]
        %v484 = vld [vmem:[%s284 + $0x2e8] sm:$0xff]
        %v485 = vld [vmem:[%s284 + $0x2f0] sm:$0xff]
        %v486 = vld [vmem:[%s284 + $0x2f8] sm:$0xff]
        %v487 = vld [vmem:[%s284 + $0x300] sm:$0xff]
        %v488 = vld [vmem:[%s284 + $0x308] sm:$0xff]
        %v489 = vld [vmem:[%s284 + $0x310] sm:$0xff]
        %v490 = vld [vmem:[%s284 + $0x318] sm:$0xff]
        %v491 = vld [vmem:[%s284 + $0x320] sm:$0xff]
        %v492 = vld [vmem:[%s284 + $0x328] sm:$0xff]
        %v493 = vld [vmem:[%s284 + $0x330] sm:$0xff]
        %v494 = vld [vmem:[%s284 + $0x338] sm:$0xff]
        %v495 = vld [vmem:[%s284 + $0x340] sm:$0xff]
        %v496 = vld [vmem:[%s284 + $0x348] sm:$0xff]
        %v497 = vld [vmem:[%s284 + $0x350] sm:$0xff]
        %v498 = vld [vmem:[%s284 + $0x358] sm:$0xff]
        %v499 = vld [vmem:[%s284 + $0x360] sm:$0xff]
        %v500 = vld [vmem:[%s284 + $0x368] sm:$0xff]
        %v501 = vld [vmem:[%s284 + $0x370] sm:$0xff]
        %v502 = vld [vmem:[%s284 + $0x378] sm:$0xff]
        %v503 = vld [vmem:[%s284 + $0x380] sm:$0xff]
        %v504 = vld [vmem:[%s284 + $0x388] sm:$0xff]
        %v505 = vld [vmem:[%s284 + $0x390] sm:$0xff]
        %v506 = vld [vmem:[%s284 + $0x398] sm:$0xff]
        %v507 = vld [vmem:[%s284 + $0x3a0] sm:$0xff]
        %v508 = vld [vmem:[%s284 + $0x3a8] sm:$0xff]
        %v509 = vld [vmem:[%s284 + $0x3b0] sm:$0xff]
        %v510 = vld [vmem:[%s284 + $0x3b8] sm:$0xff]
        %v511 = vld [vmem:[%s284 + $0x3c0] sm:$0xff]
        %v512 = vld [vmem:[%s284 + $0x3c8] sm:$0xff]
        %v513 = vld [vmem:[%s284 + $0x3d0] sm:$0xff]
        %v514 = vld [vmem:[%s284 + $0x3d8] sm:$0xff]
        %v515 = vld [vmem:[%s284 + $0x3e0] sm:$0xff]
        %v516 = vld [vmem:[%s284 + $0x3e8] sm:$0xff]
        %v517 = vld [vmem:[%s284 + $0x3f0] sm:$0xff]
        %v518 = vld [vmem:[%s284 + $0x3f8] sm:$0xff]
        %v519 = vld [vmem:[%s284 + $0x400] sm:$0xff]
        %v520 = vld [vmem:[%s284 + $0x408] sm:$0xff]
        %v521 = vld [vmem:[%s284 + $0x410] sm:$0xff]
        %v522 = vld [vmem:[%s284 + $0x418] sm:$0xff]
        %v523 = vld [vmem:[%s284 + $0x420] sm:$0xff]
        %v524 = vld [vmem:[%s284 + $0x428] sm:$0xff]
        %v525 = vld [vmem:[%s284 + $0x430] sm:$0xff]
        %v526 = vld [vmem:[%s284 + $0x438] sm:$0xff]
        %v527 = vld [vmem:[%s284 + $0x440] sm:$0xff]
        %v528 = vld [vmem:[%s284 + $0x448] sm:$0xff]
        %v529 = vld [vmem:[%s284 + $0x450] sm:$0xff]
        %v530 = vld [vmem:[%s284 + $0x458] sm:$0xff]
        %v531 = vld [vmem:[%s284 + $0x460] sm:$0xff]
        %v532 = vld [vmem:[%s284 + $0x468] sm:$0xff]
        %v533 = vld [vmem:[%s284 + $0x470] sm:$0xff]
        %v534 = vld [vmem:[%s284 + $0x478] sm:$0xff]
        %v535 = vld [vmem:[%s284 + $0x480] sm:$0xff]
        %v536 = vld [vmem:[%s284 + $0x488] sm:$0xff]
        %v537 = vld [vmem:[%s284 + $0x490] sm:$0xff]
        %v538 = vld [vmem:[%s284 + $0x498] sm:$0xff]
        %v539 = vld [vmem:[%s284 + $0x4a0] sm:$0xff]
        %v540 = vld [vmem:[%s284 + $0x4a8] sm:$0xff]
        %v541 = vld [vmem:[%s284 + $0x4b0] sm:$0xff]
        %v542 = vld [vmem:[%s284 + $0x4b8] sm:$0xff]
        %v543 = vld [vmem:[%s284 + $0x4c0] sm:$0xff]
        %v544 = vld [vmem:[%s284 + $0x4c8] sm:$0xff]
        %v545 = vld [vmem:[%s284 + $0x4d0] sm:$0xff]
        %v546 = vld [vmem:[%s284 + $0x4d8] sm:$0xff]
        %v547 = vld [vmem:[%s284 + $0x4e0] sm:$0xff]
        %v548 = vld [vmem:[%s284 + $0x4e8] sm:$0xff]
        %v549 = vld [vmem:[%s284 + $0x4f0] sm:$0xff]
        %v550 = vld [vmem:[%s284 + $0x4f8] sm:$0xff]
        %v551 = vld [vmem:[%s284 + $0x500] sm:$0xff]
        %v552 = vld [vmem:[%s284 + $0x508] sm:$0xff]
        %v553 = vld [vmem:[%s284 + $0x510] sm:$0xff]
        %v554 = vld [vmem:[%s284 + $0x518] sm:$0xff]
        %v555 = vld [vmem:[%s284 + $0x520] sm:$0xff]
        %v556 = vld [vmem:[%s284 + $0x528] sm:$0xff]
        %v557 = vld [vmem:[%s284 + $0x530] sm:$0xff]
        %v558 = vld [vmem:[%s284 + $0x538] sm:$0xff]
        %v559 = vld [vmem:[%s284 + $0x540] sm:$0xff]
        %v560 = vld [vmem:[%s284 + $0x548] sm:$0xff]
        %v561 = vld [vmem:[%s284 + $0x550] sm:$0xff]
        %v562 = vld [vmem:[%s284 + $0x558] sm:$0xff]
        %v563 = vld [vmem:[%s284 + $0x560] sm:$0xff]
        %v564 = vld [vmem:[%s284 + $0x568] sm:$0xff]
        %v565 = vld [vmem:[%s284 + $0x570] sm:$0xff]
        %v566 = vld [vmem:[%s284 + $0x578] sm:$0xff]
        %v567 = vld [vmem:[%s284 + $0x580] sm:$0xff]
        %v568 = vld [vmem:[%s284 + $0x588] sm:$0xff]
        %v569 = vld [vmem:[%s284 + $0x590] sm:$0xff]
        %v570 = vld [vmem:[%s284 + $0x598] sm:$0xff]
        %v571 = vld [vmem:[%s284 + $0x5a0] sm:$0xff]
        %v572 = vld [vmem:[%s284 + $0x5a8] sm:$0xff]
        %v573 = vld [vmem:[%s284 + $0x5b0] sm:$0xff]
        %v574 = vld [vmem:[%s284 + $0x5b8] sm:$0xff]
        %v575 = vld [vmem:[%s284 + $0x5c0] sm:$0xff]
        %v576 = vld [vmem:[%s284 + $0x5c8] sm:$0xff]
        %v577 = vld [vmem:[%s284 + $0x5d0] sm:$0xff]
        %v578 = vld [vmem:[%s284 + $0x5d8] sm:$0xff]
        %v579 = vld [vmem:[%s284 + $0x5e0] sm:$0xff]
        %v580 = vld [vmem:[%s284 + $0x5e8] sm:$0xff]
        %v581 = vld [vmem:[%s284 + $0x5f0] sm:$0xff]
        %v582 = vld [vmem:[%s284 + $0x5f8] sm:$0xff]
        %v583 = vld [vmem:[%s284 + $0x600] sm:$0xff]
        %v584 = vld [vmem:[%s284 + $0x608] sm:$0xff]
        %v585 = vld [vmem:[%s284 + $0x610] sm:$0xff]
        %v586 = vld [vmem:[%s284 + $0x618] sm:$0xff]
        %v587 = vld [vmem:[%s284 + $0x620] sm:$0xff]
        %v588 = vld [vmem:[%s284 + $0x628] sm:$0xff]
        %v589 = vld [vmem:[%s284 + $0x630] sm:$0xff]
        %v590 = vld [vmem:[%s284 + $0x638] sm:$0xff]
        %v591 = vld [vmem:[%s284 + $0x640] sm:$0xff]
        %v592 = vld [vmem:[%s284 + $0x648] sm:$0xff]
        %v593 = vld [vmem:[%s284 + $0x650] sm:$0xff]
        %v594 = vld [vmem:[%s284 + $0x658] sm:$0xff]
        %v595 = vld [vmem:[%s284 + $0x660] sm:$0xff]
        %v596 = vld [vmem:[%s284 + $0x668] sm:$0xff]
        %v597 = vld [vmem:[%s284 + $0x670] sm:$0xff]
        %v598 = vld [vmem:[%s284 + $0x678] sm:$0xff]
        %v599 = vld [vmem:[%s284 + $0x680] sm:$0xff]
        %v600 = vld [vmem:[%s284 + $0x688] sm:$0xff]
        %v601 = vld [vmem:[%s284 + $0x690] sm:$0xff]
        %v602 = vld [vmem:[%s284 + $0x698] sm:$0xff]
        %v603 = vld [vmem:[%s284 + $0x6a0] sm:$0xff]
        %v604 = vld [vmem:[%s284 + $0x6a8] sm:$0xff]
        %v605 = vld [vmem:[%s284 + $0x6b0] sm:$0xff]
        %v606 = vld [vmem:[%s284 + $0x6b8] sm:$0xff]
        %v607 = vld [vmem:[%s284 + $0x6c0] sm:$0xff]
        %v608 = vld [vmem:[%s284 + $0x6c8] sm:$0xff]
        %v609 = vld [vmem:[%s284 + $0x6d0] sm:$0xff]
        %v610 = vld [vmem:[%s284 + $0x6d8] sm:$0xff]
        %v611 = vld [vmem:[%s284 + $0x6e0] sm:$0xff]
        %v612 = vld [vmem:[%s284 + $0x6e8] sm:$0xff]
        %v613 = vld [vmem:[%s284 + $0x6f0] sm:$0xff]
        %v614 = vld [vmem:[%s284 + $0x6f8] sm:$0xff]
        %v615 = vld [vmem:[%s284 + $0x700] sm:$0xff]
        %v616 = vld [vmem:[%s284 + $0x708] sm:$0xff]
        %v617 = vld [vmem:[%s284 + $0x710] sm:$0xff]
        %v618 = vld [vmem:[%s284 + $0x718] sm:$0xff]
        %v619 = vld [vmem:[%s284 + $0x720] sm:$0xff]
        %v620 = vld [vmem:[%s284 + $0x728] sm:$0xff]
        %v621 = vld [vmem:[%s284 + $0x730] sm:$0xff]
        %v622 = vld [vmem:[%s284 + $0x738] sm:$0xff]
        %v623 = vld [vmem:[%s284 + $0x740] sm:$0xff]
        %v624 = vld [vmem:[%s284 + $0x748] sm:$0xff]
        %v625 = vld [vmem:[%s284 + $0x750] sm:$0xff]
        %v626 = vld [vmem:[%s284 + $0x758] sm:$0xff]
        %v627 = vld [vmem:[%s284 + $0x760] sm:$0xff]
        %v628 = vld [vmem:[%s284 + $0x768] sm:$0xff]
        %v629 = vld [vmem:[%s284 + $0x770] sm:$0xff]
        %v630 = vld [vmem:[%s284 + $0x778] sm:$0xff]
        %v631 = vld [vmem:[%s284 + $0x780] sm:$0xff]
        %v632 = vld [vmem:[%s284 + $0x788] sm:$0xff]
        %v633 = vld [vmem:[%s284 + $0x790] sm:$0xff]
        %v634 = vld [vmem:[%s284 + $0x798] sm:$0xff]
        %v635 = vld [vmem:[%s284 + $0x7a0] sm:$0xff]
        %v636 = vld [vmem:[%s284 + $0x7a8] sm:$0xff]
        %v637 = vld [vmem:[%s284 + $0x7b0] sm:$0xff]
        %v638 = vld [vmem:[%s284 + $0x7b8] sm:$0xff]
        %v639 = vld [vmem:[%s284 + $0x7c0] sm:$0xff]
        %v640 = vld [vmem:[%s284 + $0x7c8] sm:$0xff]
        %v641 = vld [vmem:[%s284 + $0x7d0] sm:$0xff]
        %v642 = vld [vmem:[%s284 + $0x7d8] sm:$0xff]
        %v643 = vld [vmem:[%s284 + $0x7e0] sm:$0xff]
        %v644 = vld [vmem:[%s284 + $0x7e8] sm:$0xff]
        %v645 = vld [vmem:[%s284 + $0x7f0] sm:$0xff]
        %v646 = vld [vmem:[%s284 + $0x7f8] sm:$0xff]
        %v903 = vunpack.c.l.b16 %v391
        %v904 = vunpack.c.h.b16 %v391
        %v905 = vunpack.c.l.b16 %v392
        %v906 = vunpack.c.h.b16 %v392
        %v907 = vunpack.c.l.b16 %v393
        %v908 = vunpack.c.h.b16 %v393
        %v909 = vunpack.c.l.b16 %v394
        %v910 = vunpack.c.h.b16 %v394
        %v911 = vunpack.c.l.b16 %v395
        %v912 = vunpack.c.h.b16 %v395
        %v913 = vunpack.c.l.b16 %v396
        %v914 = vunpack.c.h.b16 %v396
        %v915 = vunpack.c.l.b16 %v397
        %v916 = vunpack.c.h.b16 %v397
        %v917 = vunpack.c.l.b16 %v398
        %v918 = vunpack.c.h.b16 %v398
        %v919 = vunpack.c.l.b16 %v399
        %v920 = vunpack.c.h.b16 %v399
        %v921 = vunpack.c.l.b16 %v400
        %v922 = vunpack.c.h.b16 %v400
        %v923 = vunpack.c.l.b16 %v401
        %v924 = vunpack.c.h.b16 %v401
        %v925 = vunpack.c.l.b16 %v402
        %v926 = vunpack.c.h.b16 %v402
        %v927 = vunpack.c.l.b16 %v403
        %v928 = vunpack.c.h.b16 %v403
        %v929 = vunpack.c.l.b16 %v404
        %v930 = vunpack.c.h.b16 %v404
        %v931 = vunpack.c.l.b16 %v405
        %v932 = vunpack.c.h.b16 %v405
        %v933 = vunpack.c.l.b16 %v406
        %v934 = vunpack.c.h.b16 %v406
        %v935 = vunpack.c.l.b16 %v407
        %v936 = vunpack.c.h.b16 %v407
        %v937 = vunpack.c.l.b16 %v408
        %v938 = vunpack.c.h.b16 %v408
        %v939 = vunpack.c.l.b16 %v409
        %v940 = vunpack.c.h.b16 %v409
        %v941 = vunpack.c.l.b16 %v410
        %v942 = vunpack.c.h.b16 %v410
        %v943 = vunpack.c.l.b16 %v411
        %v944 = vunpack.c.h.b16 %v411
        %v945 = vunpack.c.l.b16 %v412
        %v946 = vunpack.c.h.b16 %v412
        %v947 = vunpack.c.l.b16 %v413
        %v948 = vunpack.c.h.b16 %v413
        %v949 = vunpack.c.l.b16 %v414
        %v950 = vunpack.c.h.b16 %v414
        %v951 = vunpack.c.l.b16 %v415
        %v952 = vunpack.c.h.b16 %v415
        %v953 = vunpack.c.l.b16 %v416
        %v954 = vunpack.c.h.b16 %v416
        %v955 = vunpack.c.l.b16 %v417
        %v956 = vunpack.c.h.b16 %v417
        %v957 = vunpack.c.l.b16 %v418
        %v958 = vunpack.c.h.b16 %v418
        %v959 = vunpack.c.l.b16 %v419
        %v960 = vunpack.c.h.b16 %v419
        %v961 = vunpack.c.l.b16 %v420
        %v962 = vunpack.c.h.b16 %v420
        %v963 = vunpack.c.l.b16 %v421
        %v964 = vunpack.c.h.b16 %v421
        %v965 = vunpack.c.l.b16 %v422
        %v966 = vunpack.c.h.b16 %v422
        %v967 = vunpack.c.l.b16 %v423
        %v968 = vunpack.c.h.b16 %v423
        %v969 = vunpack.c.l.b16 %v424
        %v970 = vunpack.c.h.b16 %v424
        %v971 = vunpack.c.l.b16 %v425
        %v972 = vunpack.c.h.b16 %v425
        %v973 = vunpack.c.l.b16 %v426
        %v974 = vunpack.c.h.b16 %v426
        %v975 = vunpack.c.l.b16 %v427
        %v976 = vunpack.c.h.b16 %v427
        %v977 = vunpack.c.l.b16 %v428
        %v978 = vunpack.c.h.b16 %v428
        %v979 = vunpack.c.l.b16 %v429
        %v980 = vunpack.c.h.b16 %v429
        %v981 = vunpack.c.l.b16 %v430
        %v982 = vunpack.c.h.b16 %v430
        %v983 = vunpack.c.l.b16 %v431
        %v984 = vunpack.c.h.b16 %v431
        %v985 = vunpack.c.l.b16 %v432
        %v986 = vunpack.c.h.b16 %v432
        %v987 = vunpack.c.l.b16 %v433
        %v988 = vunpack.c.h.b16 %v433
        %v989 = vunpack.c.l.b16 %v434
        %v990 = vunpack.c.h.b16 %v434
        %v991 = vunpack.c.l.b16 %v435
        %v992 = vunpack.c.h.b16 %v435
        %v993 = vunpack.c.l.b16 %v436
        %v994 = vunpack.c.h.b16 %v436
        %v995 = vunpack.c.l.b16 %v437
        %v996 = vunpack.c.h.b16 %v437
        %v997 = vunpack.c.l.b16 %v438
        %v998 = vunpack.c.h.b16 %v438
        %v999 = vunpack.c.l.b16 %v439
        %v1000 = vunpack.c.h.b16 %v439
        %v1001 = vunpack.c.l.b16 %v440
        %v1002 = vunpack.c.h.b16 %v440
        %v1003 = vunpack.c.l.b16 %v441
        %v1004 = vunpack.c.h.b16 %v441
        %v1005 = vunpack.c.l.b16 %v442
        %v1006 = vunpack.c.h.b16 %v442
        %v1007 = vunpack.c.l.b16 %v443
        %v1008 = vunpack.c.h.b16 %v443
        %v1009 = vunpack.c.l.b16 %v444
        %v1010 = vunpack.c.h.b16 %v444
        %v1011 = vunpack.c.l.b16 %v445
        %v1012 = vunpack.c.h.b16 %v445
        %v1013 = vunpack.c.l.b16 %v446
        %v1014 = vunpack.c.h.b16 %v446
        %v1015 = vunpack.c.l.b16 %v447
        %v1016 = vunpack.c.h.b16 %v447
        %v1017 = vunpack.c.l.b16 %v448
        %v1018 = vunpack.c.h.b16 %v448
        %v1019 = vunpack.c.l.b16 %v449
        %v1020 = vunpack.c.h.b16 %v449
        %v1021 = vunpack.c.l.b16 %v450
        %v1022 = vunpack.c.h.b16 %v450
        %v1023 = vunpack.c.l.b16 %v451
        %v1024 = vunpack.c.h.b16 %v451
        %v1025 = vunpack.c.l.b16 %v452
        %v1026 = vunpack.c.h.b16 %v452
        %v1027 = vunpack.c.l.b16 %v453
        %v1028 = vunpack.c.h.b16 %v453
        %v1029 = vunpack.c.l.b16 %v454
        %v1030 = vunpack.c.h.b16 %v454
        %v1031 = vunpack.c.l.b16 %v455
        %v1032 = vunpack.c.h.b16 %v455
        %v1033 = vunpack.c.l.b16 %v456
        %v1034 = vunpack.c.h.b16 %v456
        %v1035 = vunpack.c.l.b16 %v457
        %v1036 = vunpack.c.h.b16 %v457
        %v1037 = vunpack.c.l.b16 %v458
        %v1038 = vunpack.c.h.b16 %v458
        %v1039 = vunpack.c.l.b16 %v459
        %v1040 = vunpack.c.h.b16 %v459
        %v1041 = vunpack.c.l.b16 %v460
        %v1042 = vunpack.c.h.b16 %v460
        %v1043 = vunpack.c.l.b16 %v461
        %v1044 = vunpack.c.h.b16 %v461
        %v1045 = vunpack.c.l.b16 %v462
        %v1046 = vunpack.c.h.b16 %v462
        %v1047 = vunpack.c.l.b16 %v463
        %v1048 = vunpack.c.h.b16 %v463
        %v1049 = vunpack.c.l.b16 %v464
        %v1050 = vunpack.c.h.b16 %v464
        %v1051 = vunpack.c.l.b16 %v465
        %v1052 = vunpack.c.h.b16 %v465
        %v1053 = vunpack.c.l.b16 %v466
        %v1054 = vunpack.c.h.b16 %v466
        %v1055 = vunpack.c.l.b16 %v467
        %v1056 = vunpack.c.h.b16 %v467
        %v1057 = vunpack.c.l.b16 %v468
        %v1058 = vunpack.c.h.b16 %v468
        %v1059 = vunpack.c.l.b16 %v469
        %v1060 = vunpack.c.h.b16 %v469
        %v1061 = vunpack.c.l.b16 %v470
        %v1062 = vunpack.c.h.b16 %v470
        %v1063 = vunpack.c.l.b16 %v471
        %v1064 = vunpack.c.h.b16 %v471
        %v1065 = vunpack.c.l.b16 %v472
        %v1066 = vunpack.c.h.b16 %v472
        %v1067 = vunpack.c.l.b16 %v473
        %v1068 = vunpack.c.h.b16 %v473
        %v1069 = vunpack.c.l.b16 %v474
        %v1070 = vunpack.c.h.b16 %v474
        %v1071 = vunpack.c.l.b16 %v475
        %v1072 = vunpack.c.h.b16 %v475
        %v1073 = vunpack.c.l.b16 %v476
        %v1074 = vunpack.c.h.b16 %v476
        %v1075 = vunpack.c.l.b16 %v477
        %v1076 = vunpack.c.h.b16 %v477
        %v1077 = vunpack.c.l.b16 %v478
        %v1078 = vunpack.c.h.b16 %v478
        %v1079 = vunpack.c.l.b16 %v479
        %v1080 = vunpack.c.h.b16 %v479
        %v1081 = vunpack.c.l.b16 %v480
        %v1082 = vunpack.c.h.b16 %v480
        %v1083 = vunpack.c.l.b16 %v481
        %v1084 = vunpack.c.h.b16 %v481
        %v1085 = vunpack.c.l.b16 %v482
        %v1086 = vunpack.c.h.b16 %v482
        %v1087 = vunpack.c.l.b16 %v483
        %v1088 = vunpack.c.h.b16 %v483
        %v1089 = vunpack.c.l.b16 %v484
        %v1090 = vunpack.c.h.b16 %v484
        %v1091 = vunpack.c.l.b16 %v485
        %v1092 = vunpack.c.h.b16 %v485
        %v1093 = vunpack.c.l.b16 %v486
        %v1094 = vunpack.c.h.b16 %v486
        %v1095 = vunpack.c.l.b16 %v487
        %v1096 = vunpack.c.h.b16 %v487
        %v1097 = vunpack.c.l.b16 %v488
        %v1098 = vunpack.c.h.b16 %v488
        %v1099 = vunpack.c.l.b16 %v489
        %v1100 = vunpack.c.h.b16 %v489
        %v1101 = vunpack.c.l.b16 %v490
        %v1102 = vunpack.c.h.b16 %v490
        %v1103 = vunpack.c.l.b16 %v491
        %v1104 = vunpack.c.h.b16 %v491
        %v1105 = vunpack.c.l.b16 %v492
        %v1106 = vunpack.c.h.b16 %v492
        %v1107 = vunpack.c.l.b16 %v493
        %v1108 = vunpack.c.h.b16 %v493
        %v1109 = vunpack.c.l.b16 %v494
        %v1110 = vunpack.c.h.b16 %v494
        %v1111 = vunpack.c.l.b16 %v495
        %v1112 = vunpack.c.h.b16 %v495
        %v1113 = vunpack.c.l.b16 %v496
        %v1114 = vunpack.c.h.b16 %v496
        %v1115 = vunpack.c.l.b16 %v497
        %v1116 = vunpack.c.h.b16 %v497
        %v1117 = vunpack.c.l.b16 %v498
        %v1118 = vunpack.c.h.b16 %v498
        %v1119 = vunpack.c.l.b16 %v499
        %v1120 = vunpack.c.h.b16 %v499
        %v1121 = vunpack.c.l.b16 %v500
        %v1122 = vunpack.c.h.b16 %v500
        %v1123 = vunpack.c.l.b16 %v501
        %v1124 = vunpack.c.h.b16 %v501
        %v1125 = vunpack.c.l.b16 %v502
        %v1126 = vunpack.c.h.b16 %v502
        %v1127 = vunpack.c.l.b16 %v503
        %v1128 = vunpack.c.h.b16 %v503
        %v1129 = vunpack.c.l.b16 %v504
        %v1130 = vunpack.c.h.b16 %v504
        %v1131 = vunpack.c.l.b16 %v505
        %v1132 = vunpack.c.h.b16 %v505
        %v1133 = vunpack.c.l.b16 %v506
        %v1134 = vunpack.c.h.b16 %v506
        %v1135 = vunpack.c.l.b16 %v507
        %v1136 = vunpack.c.h.b16 %v507
        %v1137 = vunpack.c.l.b16 %v508
        %v1138 = vunpack.c.h.b16 %v508
        %v1139 = vunpack.c.l.b16 %v509
        %v1140 = vunpack.c.h.b16 %v509
        %v1141 = vunpack.c.l.b16 %v510
        %v1142 = vunpack.c.h.b16 %v510
        %v1143 = vunpack.c.l.b16 %v511
        %v1144 = vunpack.c.h.b16 %v511
        %v1145 = vunpack.c.l.b16 %v512
        %v1146 = vunpack.c.h.b16 %v512
        %v1147 = vunpack.c.l.b16 %v513
        %v1148 = vunpack.c.h.b16 %v513
        %v1149 = vunpack.c.l.b16 %v514
        %v1150 = vunpack.c.h.b16 %v514
        %v1151 = vunpack.c.l.b16 %v515
        %v1152 = vunpack.c.h.b16 %v515
        %v1153 = vunpack.c.l.b16 %v516
        %v1154 = vunpack.c.h.b16 %v516
        %v1155 = vunpack.c.l.b16 %v517
        %v1156 = vunpack.c.h.b16 %v517
        %v1157 = vunpack.c.l.b16 %v518
        %v1158 = vunpack.c.h.b16 %v518
        %v1159 = vunpack.c.l.b16 %v519
        %v1160 = vunpack.c.h.b16 %v519
        %v1161 = vunpack.c.l.b16 %v520
        %v1162 = vunpack.c.h.b16 %v520
        %v1163 = vunpack.c.l.b16 %v521
        %v1164 = vunpack.c.h.b16 %v521
        %v1165 = vunpack.c.l.b16 %v522
        %v1166 = vunpack.c.h.b16 %v522
        %v1167 = vunpack.c.l.b16 %v523
        %v1168 = vunpack.c.h.b16 %v523
        %v1169 = vunpack.c.l.b16 %v524
        %v1170 = vunpack.c.h.b16 %v524
        %v1171 = vunpack.c.l.b16 %v525
        %v1172 = vunpack.c.h.b16 %v525
        %v1173 = vunpack.c.l.b16 %v526
        %v1174 = vunpack.c.h.b16 %v526
        %v1175 = vunpack.c.l.b16 %v527
        %v1176 = vunpack.c.h.b16 %v527
        %v1177 = vunpack.c.l.b16 %v528
        %v1178 = vunpack.c.h.b16 %v528
        %v1179 = vunpack.c.l.b16 %v529
        %v1180 = vunpack.c.h.b16 %v529
        %v1181 = vunpack.c.l.b16 %v530
        %v1182 = vunpack.c.h.b16 %v530
        %v1183 = vunpack.c.l.b16 %v531
        %v1184 = vunpack.c.h.b16 %v531
        %v1185 = vunpack.c.l.b16 %v532
        %v1186 = vunpack.c.h.b16 %v532
        %v1187 = vunpack.c.l.b16 %v533
        %v1188 = vunpack.c.h.b16 %v533
        %v1189 = vunpack.c.l.b16 %v534
        %v1190 = vunpack.c.h.b16 %v534
        %v1191 = vunpack.c.l.b16 %v535
        %v1192 = vunpack.c.h.b16 %v535
        %v1193 = vunpack.c.l.b16 %v536
        %v1194 = vunpack.c.h.b16 %v536
        %v1195 = vunpack.c.l.b16 %v537
        %v1196 = vunpack.c.h.b16 %v537
        %v1197 = vunpack.c.l.b16 %v538
        %v1198 = vunpack.c.h.b16 %v538
        %v1199 = vunpack.c.l.b16 %v539
        %v1200 = vunpack.c.h.b16 %v539
        %v1201 = vunpack.c.l.b16 %v540
        %v1202 = vunpack.c.h.b16 %v540
        %v1203 = vunpack.c.l.b16 %v541
        %v1204 = vunpack.c.h.b16 %v541
        %v1205 = vunpack.c.l.b16 %v542
        %v1206 = vunpack.c.h.b16 %v542
        %v1207 = vunpack.c.l.b16 %v543
        %v1208 = vunpack.c.h.b16 %v543
        %v1209 = vunpack.c.l.b16 %v544
        %v1210 = vunpack.c.h.b16 %v544
        %v1211 = vunpack.c.l.b16 %v545
        %v1212 = vunpack.c.h.b16 %v545
        %v1213 = vunpack.c.l.b16 %v546
        %v1214 = vunpack.c.h.b16 %v546
        %v1215 = vunpack.c.l.b16 %v547
        %v1216 = vunpack.c.h.b16 %v547
        %v1217 = vunpack.c.l.b16 %v548
        %v1218 = vunpack.c.h.b16 %v548
        %v1219 = vunpack.c.l.b16 %v549
        %v1220 = vunpack.c.h.b16 %v549
        %v1221 = vunpack.c.l.b16 %v550
        %v1222 = vunpack.c.h.b16 %v550
        %v1223 = vunpack.c.l.b16 %v551
        %v1224 = vunpack.c.h.b16 %v551
        %v1225 = vunpack.c.l.b16 %v552
        %v1226 = vunpack.c.h.b16 %v552
        %v1227 = vunpack.c.l.b16 %v553
        %v1228 = vunpack.c.h.b16 %v553
        %v1229 = vunpack.c.l.b16 %v554
        %v1230 = vunpack.c.h.b16 %v554
        %v1231 = vunpack.c.l.b16 %v555
        %v1232 = vunpack.c.h.b16 %v555
        %v1233 = vunpack.c.l.b16 %v556
        %v1234 = vunpack.c.h.b16 %v556
        %v1235 = vunpack.c.l.b16 %v557
        %v1236 = vunpack.c.h.b16 %v557
        %v1237 = vunpack.c.l.b16 %v558
        %v1238 = vunpack.c.h.b16 %v558
        %v1239 = vunpack.c.l.b16 %v559
        %v1240 = vunpack.c.h.b16 %v559
        %v1241 = vunpack.c.l.b16 %v560
        %v1242 = vunpack.c.h.b16 %v560
        %v1243 = vunpack.c.l.b16 %v561
        %v1244 = vunpack.c.h.b16 %v561
        %v1245 = vunpack.c.l.b16 %v562
        %v1246 = vunpack.c.h.b16 %v562
        %v1247 = vunpack.c.l.b16 %v563
        %v1248 = vunpack.c.h.b16 %v563
        %v1249 = vunpack.c.l.b16 %v564
        %v1250 = vunpack.c.h.b16 %v564
        %v1251 = vunpack.c.l.b16 %v565
        %v1252 = vunpack.c.h.b16 %v565
        %v1253 = vunpack.c.l.b16 %v566
        %v1254 = vunpack.c.h.b16 %v566
        %v1255 = vunpack.c.l.b16 %v567
        %v1256 = vunpack.c.h.b16 %v567
        %v1257 = vunpack.c.l.b16 %v568
        %v1258 = vunpack.c.h.b16 %v568
        %v1259 = vunpack.c.l.b16 %v569
        %v1260 = vunpack.c.h.b16 %v569
        %v1261 = vunpack.c.l.b16 %v570
        %v1262 = vunpack.c.h.b16 %v570
        %v1263 = vunpack.c.l.b16 %v571
        %v1264 = vunpack.c.h.b16 %v571
        %v1265 = vunpack.c.l.b16 %v572
        %v1266 = vunpack.c.h.b16 %v572
        %v1267 = vunpack.c.l.b16 %v573
        %v1268 = vunpack.c.h.b16 %v573
        %v1269 = vunpack.c.l.b16 %v574
        %v1270 = vunpack.c.h.b16 %v574
        %v1271 = vunpack.c.l.b16 %v575
        %v1272 = vunpack.c.h.b16 %v575
        %v1273 = vunpack.c.l.b16 %v576
        %v1274 = vunpack.c.h.b16 %v576
        %v1275 = vunpack.c.l.b16 %v577
        %v1276 = vunpack.c.h.b16 %v577
        %v1277 = vunpack.c.l.b16 %v578
        %v1278 = vunpack.c.h.b16 %v578
        %v1279 = vunpack.c.l.b16 %v579
        %v1280 = vunpack.c.h.b16 %v579
        %v1281 = vunpack.c.l.b16 %v580
        %v1282 = vunpack.c.h.b16 %v580
        %v1283 = vunpack.c.l.b16 %v581
        %v1284 = vunpack.c.h.b16 %v581
        %v1285 = vunpack.c.l.b16 %v582
        %v1286 = vunpack.c.h.b16 %v582
        %v1287 = vunpack.c.l.b16 %v583
        %v1288 = vunpack.c.h.b16 %v583
        %v1289 = vunpack.c.l.b16 %v584
        %v1290 = vunpack.c.h.b16 %v584
        %v1291 = vunpack.c.l.b16 %v585
        %v1292 = vunpack.c.h.b16 %v585
        %v1293 = vunpack.c.l.b16 %v586
        %v1294 = vunpack.c.h.b16 %v586
        %v1295 = vunpack.c.l.b16 %v587
        %v1296 = vunpack.c.h.b16 %v587
        %v1297 = vunpack.c.l.b16 %v588
        %v1298 = vunpack.c.h.b16 %v588
        %v1299 = vunpack.c.l.b16 %v589
        %v1300 = vunpack.c.h.b16 %v589
        %v1301 = vunpack.c.l.b16 %v590
        %v1302 = vunpack.c.h.b16 %v590
        %v1303 = vunpack.c.l.b16 %v591
        %v1304 = vunpack.c.h.b16 %v591
        %v1305 = vunpack.c.l.b16 %v592
        %v1306 = vunpack.c.h.b16 %v592
        %v1307 = vunpack.c.l.b16 %v593
        %v1308 = vunpack.c.h.b16 %v593
        %v1309 = vunpack.c.l.b16 %v594
        %v1310 = vunpack.c.h.b16 %v594
        %v1311 = vunpack.c.l.b16 %v595
        %v1312 = vunpack.c.h.b16 %v595
        %v1313 = vunpack.c.l.b16 %v596
        %v1314 = vunpack.c.h.b16 %v596
        %v1315 = vunpack.c.l.b16 %v597
        %v1316 = vunpack.c.h.b16 %v597
        %v1317 = vunpack.c.l.b16 %v598
        %v1318 = vunpack.c.h.b16 %v598
        %v1319 = vunpack.c.l.b16 %v599
        %v1320 = vunpack.c.h.b16 %v599
        %v1321 = vunpack.c.l.b16 %v600
        %v1322 = vunpack.c.h.b16 %v600
        %v1323 = vunpack.c.l.b16 %v601
        %v1324 = vunpack.c.h.b16 %v601
        %v1325 = vunpack.c.l.b16 %v602
        %v1326 = vunpack.c.h.b16 %v602
        %v1327 = vunpack.c.l.b16 %v603
        %v1328 = vunpack.c.h.b16 %v603
        %v1329 = vunpack.c.l.b16 %v604
        %v1330 = vunpack.c.h.b16 %v604
        %v1331 = vunpack.c.l.b16 %v605
        %v1332 = vunpack.c.h.b16 %v605
        %v1333 = vunpack.c.l.b16 %v606
        %v1334 = vunpack.c.h.b16 %v606
        %v1335 = vunpack.c.l.b16 %v607
        %v1336 = vunpack.c.h.b16 %v607
        %v1337 = vunpack.c.l.b16 %v608
        %v1338 = vunpack.c.h.b16 %v608
        %v1339 = vunpack.c.l.b16 %v609
        %v1340 = vunpack.c.h.b16 %v609
        %v1341 = vunpack.c.l.b16 %v610
        %v1342 = vunpack.c.h.b16 %v610
        %v1343 = vunpack.c.l.b16 %v611
        %v1344 = vunpack.c.h.b16 %v611
        %v1345 = vunpack.c.l.b16 %v612
        %v1346 = vunpack.c.h.b16 %v612
        %v1347 = vunpack.c.l.b16 %v613
        %v1348 = vunpack.c.h.b16 %v613
        %v1349 = vunpack.c.l.b16 %v614
        %v1350 = vunpack.c.h.b16 %v614
        %v1351 = vunpack.c.l.b16 %v615
        %v1352 = vunpack.c.h.b16 %v615
        %v1353 = vunpack.c.l.b16 %v616
        %v1354 = vunpack.c.h.b16 %v616
        %v1355 = vunpack.c.l.b16 %v617
        %v1356 = vunpack.c.h.b16 %v617
        %v1357 = vunpack.c.l.b16 %v618
        %v1358 = vunpack.c.h.b16 %v618
        %v1359 = vunpack.c.l.b16 %v619
        %v1360 = vunpack.c.h.b16 %v619
        %v1361 = vunpack.c.l.b16 %v620
        %v1362 = vunpack.c.h.b16 %v620
        %v1363 = vunpack.c.l.b16 %v621
        %v1364 = vunpack.c.h.b16 %v621
        %v1365 = vunpack.c.l.b16 %v622
        %v1366 = vunpack.c.h.b16 %v622
        %v1367 = vunpack.c.l.b16 %v623
        %v1368 = vunpack.c.h.b16 %v623
        %v1369 = vunpack.c.l.b16 %v624
        %v1370 = vunpack.c.h.b16 %v624
        %v1371 = vunpack.c.l.b16 %v625
        %v1372 = vunpack.c.h.b16 %v625
        %v1373 = vunpack.c.l.b16 %v626
        %v1374 = vunpack.c.h.b16 %v626
        %v1375 = vunpack.c.l.b16 %v627
        %v1376 = vunpack.c.h.b16 %v627
        %v1377 = vunpack.c.l.b16 %v628
        %v1378 = vunpack.c.h.b16 %v628
        %v1379 = vunpack.c.l.b16 %v629
        %v1380 = vunpack.c.h.b16 %v629
        %v1381 = vunpack.c.l.b16 %v630
        %v1382 = vunpack.c.h.b16 %v630
        %v1383 = vunpack.c.l.b16 %v631
        %v1384 = vunpack.c.h.b16 %v631
        %v1385 = vunpack.c.l.b16 %v632
        %v1386 = vunpack.c.h.b16 %v632
        %v1387 = vunpack.c.l.b16 %v633
        %v1388 = vunpack.c.h.b16 %v633
        %v1389 = vunpack.c.l.b16 %v634
        %v1390 = vunpack.c.h.b16 %v634
        %v1391 = vunpack.c.l.b16 %v635
        %v1392 = vunpack.c.h.b16 %v635
        %v1393 = vunpack.c.l.b16 %v636
        %v1394 = vunpack.c.h.b16 %v636
        %v1395 = vunpack.c.l.b16 %v637
        %v1396 = vunpack.c.h.b16 %v637
        %v1397 = vunpack.c.l.b16 %v638
        %v1398 = vunpack.c.h.b16 %v638
        %v1399 = vunpack.c.l.b16 %v639
        %v1400 = vunpack.c.h.b16 %v639
        %v1401 = vunpack.c.l.b16 %v640
        %v1402 = vunpack.c.h.b16 %v640
        %v1403 = vunpack.c.l.b16 %v641
        %v1404 = vunpack.c.h.b16 %v641
        %v1405 = vunpack.c.l.b16 %v642
        %v1406 = vunpack.c.h.b16 %v642
        %v1407 = vunpack.c.l.b16 %v643
        %v1408 = vunpack.c.h.b16 %v643
        %v1409 = vunpack.c.l.b16 %v644
        %v1410 = vunpack.c.h.b16 %v644
        %v1411 = vunpack.c.l.b16 %v645
        %v1412 = vunpack.c.h.b16 %v645
        %v1413 = vunpack.c.l.b16 %v646
        %v1414 = vunpack.c.h.b16 %v646
        %v1415 = vpack.c.b16 %v907, %v903
        %v1416 = vpack.c.b16 %v908, %v904
        %v1417 = vpack.c.b16 %v909, %v905
        %v1418 = vpack.c.b16 %v910, %v906
        %v1419 = vpack.c.b16 %v915, %v911
        %v1420 = vpack.c.b16 %v916, %v912
        %v1421 = vpack.c.b16 %v917, %v913
        %v1422 = vpack.c.b16 %v918, %v914
        %v1423 = vpack.c.b16 %v923, %v919
        %v1424 = vpack.c.b16 %v924, %v920
        %v1425 = vpack.c.b16 %v925, %v921
        %v1426 = vpack.c.b16 %v926, %v922
        %v1427 = vpack.c.b16 %v931, %v927
        %v1428 = vpack.c.b16 %v932, %v928
        %v1429 = vpack.c.b16 %v933, %v929
        %v1430 = vpack.c.b16 %v934, %v930
        %v1431 = vpack.c.b16 %v939, %v935
        %v1432 = vpack.c.b16 %v940, %v936
        %v1433 = vpack.c.b16 %v941, %v937
        %v1434 = vpack.c.b16 %v942, %v938
        %v1435 = vpack.c.b16 %v947, %v943
        %v1436 = vpack.c.b16 %v948, %v944
        %v1437 = vpack.c.b16 %v949, %v945
        %v1438 = vpack.c.b16 %v950, %v946
        %v1439 = vpack.c.b16 %v955, %v951
        %v1440 = vpack.c.b16 %v956, %v952
        %v1441 = vpack.c.b16 %v957, %v953
        %v1442 = vpack.c.b16 %v958, %v954
        %v1443 = vpack.c.b16 %v963, %v959
        %v1444 = vpack.c.b16 %v964, %v960
        %v1445 = vpack.c.b16 %v965, %v961
        %v1446 = vpack.c.b16 %v966, %v962
        %v1447 = vpack.c.b16 %v971, %v967
        %v1448 = vpack.c.b16 %v972, %v968
        %v1449 = vpack.c.b16 %v973, %v969
        %v1450 = vpack.c.b16 %v974, %v970
        %v1451 = vpack.c.b16 %v979, %v975
        %v1452 = vpack.c.b16 %v980, %v976
        %v1453 = vpack.c.b16 %v981, %v977
        %v1454 = vpack.c.b16 %v982, %v978
        %v1455 = vpack.c.b16 %v987, %v983
        %v1456 = vpack.c.b16 %v988, %v984
        %v1457 = vpack.c.b16 %v989, %v985
        %v1458 = vpack.c.b16 %v990, %v986
        %v1459 = vpack.c.b16 %v995, %v991
        %v1460 = vpack.c.b16 %v996, %v992
        %v1461 = vpack.c.b16 %v997, %v993
        %v1462 = vpack.c.b16 %v998, %v994
        %v1463 = vpack.c.b16 %v1003, %v999
        %v1464 = vpack.c.b16 %v1004, %v1000
        %v1465 = vpack.c.b16 %v1005, %v1001
        %v1466 = vpack.c.b16 %v1006, %v1002
        %v1467 = vpack.c.b16 %v1011, %v1007
        %v1468 = vpack.c.b16 %v1012, %v1008
        %v1469 = vpack.c.b16 %v1013, %v1009
        %v1470 = vpack.c.b16 %v1014, %v1010
        %v1471 = vpack.c.b16 %v1019, %v1015
        %v1472 = vpack.c.b16 %v1020, %v1016
        %v1473 = vpack.c.b16 %v1021, %v1017
        %v1474 = vpack.c.b16 %v1022, %v1018
        %v1475 = vpack.c.b16 %v1027, %v1023
        %v1476 = vpack.c.b16 %v1028, %v1024
        %v1477 = vpack.c.b16 %v1029, %v1025
        %v1478 = vpack.c.b16 %v1030, %v1026
        %v1479 = vpack.c.b16 %v1035, %v1031
        %v1480 = vpack.c.b16 %v1036, %v1032
        %v1481 = vpack.c.b16 %v1037, %v1033
        %v1482 = vpack.c.b16 %v1038, %v1034
        %v1483 = vpack.c.b16 %v1043, %v1039
        %v1484 = vpack.c.b16 %v1044, %v1040
        %v1485 = vpack.c.b16 %v1045, %v1041
        %v1486 = vpack.c.b16 %v1046, %v1042
        %v1487 = vpack.c.b16 %v1051, %v1047
        %v1488 = vpack.c.b16 %v1052, %v1048
        %v1489 = vpack.c.b16 %v1053, %v1049
        %v1490 = vpack.c.b16 %v1054, %v1050
        %v1491 = vpack.c.b16 %v1059, %v1055
        %v1492 = vpack.c.b16 %v1060, %v1056
        %v1493 = vpack.c.b16 %v1061, %v1057
        %v1494 = vpack.c.b16 %v1062, %v1058
        %v1495 = vpack.c.b16 %v1067, %v1063
        %v1496 = vpack.c.b16 %v1068, %v1064
        %v1497 = vpack.c.b16 %v1069, %v1065
        %v1498 = vpack.c.b16 %v1070, %v1066
        %v1499 = vpack.c.b16 %v1075, %v1071
        %v1500 = vpack.c.b16 %v1076, %v1072
        %v1501 = vpack.c.b16 %v1077, %v1073
        %v1502 = vpack.c.b16 %v1078, %v1074
        %v1503 = vpack.c.b16 %v1083, %v1079
        %v1504 = vpack.c.b16 %v1084, %v1080
        %v1505 = vpack.c.b16 %v1085, %v1081
        %v1506 = vpack.c.b16 %v1086, %v1082
        %v1507 = vpack.c.b16 %v1091, %v1087
        %v1508 = vpack.c.b16 %v1092, %v1088
        %v1509 = vpack.c.b16 %v1093, %v1089
        %v1510 = vpack.c.b16 %v1094, %v1090
        %v1511 = vpack.c.b16 %v1099, %v1095
        %v1512 = vpack.c.b16 %v1100, %v1096
        %v1513 = vpack.c.b16 %v1101, %v1097
        %v1514 = vpack.c.b16 %v1102, %v1098
        %v1515 = vpack.c.b16 %v1107, %v1103
        %v1516 = vpack.c.b16 %v1108, %v1104
        %v1517 = vpack.c.b16 %v1109, %v1105
        %v1518 = vpack.c.b16 %v1110, %v1106
        %v1519 = vpack.c.b16 %v1115, %v1111
        %v1520 = vpack.c.b16 %v1116, %v1112
        %v1521 = vpack.c.b16 %v1117, %v1113
        %v1522 = vpack.c.b16 %v1118, %v1114
        %v1523 = vpack.c.b16 %v1123, %v1119
        %v1524 = vpack.c.b16 %v1124, %v1120
        %v1525 = vpack.c.b16 %v1125, %v1121
        %v1526 = vpack.c.b16 %v1126, %v1122
        %v1527 = vpack.c.b16 %v1131, %v1127
        %v1528 = vpack.c.b16 %v1132, %v1128
        %v1529 = vpack.c.b16 %v1133, %v1129
        %v1530 = vpack.c.b16 %v1134, %v1130
        %v1531 = vpack.c.b16 %v1139, %v1135
        %v1532 = vpack.c.b16 %v1140, %v1136
        %v1533 = vpack.c.b16 %v1141, %v1137
        %v1534 = vpack.c.b16 %v1142, %v1138
        %v1535 = vpack.c.b16 %v1147, %v1143
        %v1536 = vpack.c.b16 %v1148, %v1144
        %v1537 = vpack.c.b16 %v1149, %v1145
        %v1538 = vpack.c.b16 %v1150, %v1146
        %v1539 = vpack.c.b16 %v1155, %v1151
        %v1540 = vpack.c.b16 %v1156, %v1152
        %v1541 = vpack.c.b16 %v1157, %v1153
        %v1542 = vpack.c.b16 %v1158, %v1154
        %v1543 = vpack.c.b16 %v1163, %v1159
        %v1544 = vpack.c.b16 %v1164, %v1160
        %v1545 = vpack.c.b16 %v1165, %v1161
        %v1546 = vpack.c.b16 %v1166, %v1162
        %v1547 = vpack.c.b16 %v1171, %v1167
        %v1548 = vpack.c.b16 %v1172, %v1168
        %v1549 = vpack.c.b16 %v1173, %v1169
        %v1550 = vpack.c.b16 %v1174, %v1170
        %v1551 = vpack.c.b16 %v1179, %v1175
        %v1552 = vpack.c.b16 %v1180, %v1176
        %v1553 = vpack.c.b16 %v1181, %v1177
        %v1554 = vpack.c.b16 %v1182, %v1178
        %v1555 = vpack.c.b16 %v1187, %v1183
        %v1556 = vpack.c.b16 %v1188, %v1184
        %v1557 = vpack.c.b16 %v1189, %v1185
        %v1558 = vpack.c.b16 %v1190, %v1186
        %v1559 = vpack.c.b16 %v1195, %v1191
        %v1560 = vpack.c.b16 %v1196, %v1192
        %v1561 = vpack.c.b16 %v1197, %v1193
        %v1562 = vpack.c.b16 %v1198, %v1194
        %v1563 = vpack.c.b16 %v1203, %v1199
        %v1564 = vpack.c.b16 %v1204, %v1200
        %v1565 = vpack.c.b16 %v1205, %v1201
        %v1566 = vpack.c.b16 %v1206, %v1202
        %v1567 = vpack.c.b16 %v1211, %v1207
        %v1568 = vpack.c.b16 %v1212, %v1208
        %v1569 = vpack.c.b16 %v1213, %v1209
        %v1570 = vpack.c.b16 %v1214, %v1210
        %v1571 = vpack.c.b16 %v1219, %v1215
        %v1572 = vpack.c.b16 %v1220, %v1216
        %v1573 = vpack.c.b16 %v1221, %v1217
        %v1574 = vpack.c.b16 %v1222, %v1218
        %v1575 = vpack.c.b16 %v1227, %v1223
        %v1576 = vpack.c.b16 %v1228, %v1224
        %v1577 = vpack.c.b16 %v1229, %v1225
        %v1578 = vpack.c.b16 %v1230, %v1226
        %v1579 = vpack.c.b16 %v1235, %v1231
        %v1580 = vpack.c.b16 %v1236, %v1232
        %v1581 = vpack.c.b16 %v1237, %v1233
        %v1582 = vpack.c.b16 %v1238, %v1234
        %v1583 = vpack.c.b16 %v1243, %v1239
        %v1584 = vpack.c.b16 %v1244, %v1240
        %v1585 = vpack.c.b16 %v1245, %v1241
        %v1586 = vpack.c.b16 %v1246, %v1242
        %v1587 = vpack.c.b16 %v1251, %v1247
        %v1588 = vpack.c.b16 %v1252, %v1248
        %v1589 = vpack.c.b16 %v1253, %v1249
        %v1590 = vpack.c.b16 %v1254, %v1250
        %v1591 = vpack.c.b16 %v1259, %v1255
        %v1592 = vpack.c.b16 %v1260, %v1256
        %v1593 = vpack.c.b16 %v1261, %v1257
        %v1594 = vpack.c.b16 %v1262, %v1258
        %v1595 = vpack.c.b16 %v1267, %v1263
        %v1596 = vpack.c.b16 %v1268, %v1264
        %v1597 = vpack.c.b16 %v1269, %v1265
        %v1598 = vpack.c.b16 %v1270, %v1266
        %v1599 = vpack.c.b16 %v1275, %v1271
        %v1600 = vpack.c.b16 %v1276, %v1272
        %v1601 = vpack.c.b16 %v1277, %v1273
        %v1602 = vpack.c.b16 %v1278, %v1274
        %v1603 = vpack.c.b16 %v1283, %v1279
        %v1604 = vpack.c.b16 %v1284, %v1280
        %v1605 = vpack.c.b16 %v1285, %v1281
        %v1606 = vpack.c.b16 %v1286, %v1282
        %v1607 = vpack.c.b16 %v1291, %v1287
        %v1608 = vpack.c.b16 %v1292, %v1288
        %v1609 = vpack.c.b16 %v1293, %v1289
        %v1610 = vpack.c.b16 %v1294, %v1290
        %v1611 = vpack.c.b16 %v1299, %v1295
        %v1612 = vpack.c.b16 %v1300, %v1296
        %v1613 = vpack.c.b16 %v1301, %v1297
        %v1614 = vpack.c.b16 %v1302, %v1298
        %v1615 = vpack.c.b16 %v1307, %v1303
        %v1616 = vpack.c.b16 %v1308, %v1304
        %v1617 = vpack.c.b16 %v1309, %v1305
        %v1618 = vpack.c.b16 %v1310, %v1306
        %v1619 = vpack.c.b16 %v1315, %v1311
        %v1620 = vpack.c.b16 %v1316, %v1312
        %v1621 = vpack.c.b16 %v1317, %v1313
        %v1622 = vpack.c.b16 %v1318, %v1314
        %v1623 = vpack.c.b16 %v1323, %v1319
        %v1624 = vpack.c.b16 %v1324, %v1320
        %v1625 = vpack.c.b16 %v1325, %v1321
        %v1626 = vpack.c.b16 %v1326, %v1322
        %v1627 = vpack.c.b16 %v1331, %v1327
        %v1628 = vpack.c.b16 %v1332, %v1328
        %v1629 = vpack.c.b16 %v1333, %v1329
        %v1630 = vpack.c.b16 %v1334, %v1330
        %v1631 = vpack.c.b16 %v1339, %v1335
        %v1632 = vpack.c.b16 %v1340, %v1336
        %v1633 = vpack.c.b16 %v1341, %v1337
        %v1634 = vpack.c.b16 %v1342, %v1338
        %v1635 = vpack.c.b16 %v1347, %v1343
        %v1636 = vpack.c.b16 %v1348, %v1344
        %v1637 = vpack.c.b16 %v1349, %v1345
        %v1638 = vpack.c.b16 %v1350, %v1346
        %v1639 = vpack.c.b16 %v1355, %v1351
        %v1640 = vpack.c.b16 %v1356, %v1352
        %v1641 = vpack.c.b16 %v1357, %v1353
        %v1642 = vpack.c.b16 %v1358, %v1354
        %v1643 = vpack.c.b16 %v1363, %v1359
        %v1644 = vpack.c.b16 %v1364, %v1360
        %v1645 = vpack.c.b16 %v1365, %v1361
        %v1646 = vpack.c.b16 %v1366, %v1362
        %v1647 = vpack.c.b16 %v1371, %v1367
        %v1648 = vpack.c.b16 %v1372, %v1368
        %v1649 = vpack.c.b16 %v1373, %v1369
        %v1650 = vpack.c.b16 %v1374, %v1370
        %v1651 = vpack.c.b16 %v1379, %v1375
        %v1652 = vpack.c.b16 %v1380, %v1376
        %v1653 = vpack.c.b16 %v1381, %v1377
        %v1654 = vpack.c.b16 %v1382, %v1378
        %v1655 = vpack.c.b16 %v1387, %v1383
        %v1656 = vpack.c.b16 %v1388, %v1384
        %v1657 = vpack.c.b16 %v1389, %v1385
        %v1658 = vpack.c.b16 %v1390, %v1386
        %v1659 = vpack.c.b16 %v1395, %v1391
        %v1660 = vpack.c.b16 %v1396, %v1392
        %v1661 = vpack.c.b16 %v1397, %v1393
        %v1662 = vpack.c.b16 %v1398, %v1394
        %v1663 = vpack.c.b16 %v1403, %v1399
        %v1664 = vpack.c.b16 %v1404, %v1400
        %v1665 = vpack.c.b16 %v1405, %v1401
        %v1666 = vpack.c.b16 %v1406, %v1402
        %v1667 = vpack.c.b16 %v1411, %v1407
        %v1668 = vpack.c.b16 %v1412, %v1408
        %v1669 = vpack.c.b16 %v1413, %v1409
        %v1670 = vpack.c.b16 %v1414, %v1410
        %1927 = vmatprep.subr.bf16.mxu0 %v1416
        %1928 = vmatpush1.bf16.msra.mxu0 %v1415
        %1929 = vmatprep.subr.bf16.mxu0 %v1420
        %1930 = vmatpush1.bf16.msra.mxu0 %v1419
        %1931 = vmatprep.subr.bf16.mxu0 %v1424
        %1932 = vmatpush1.bf16.msra.mxu0 %v1423
        %1933 = vmatprep.subr.bf16.mxu0 %v1428
        %1934 = vmatpush1.bf16.msra.mxu0 %v1427
        %1935 = vmatprep.subr.bf16.mxu0 %v1432
        %1936 = vmatpush1.bf16.msra.mxu0 %v1431
        %1937 = vmatprep.subr.bf16.mxu0 %v1436
        %1938 = vmatpush1.bf16.msra.mxu0 %v1435
        %1939 = vmatprep.subr.bf16.mxu0 %v1440
        %1940 = vmatpush1.bf16.msra.mxu0 %v1439
        %1941 = vmatprep.subr.bf16.mxu0 %v1444
        %1942 = vmatpush1.bf16.msra.mxu0 %v1443
        %1943 = vmatprep.subr.bf16.mxu0 %v1448
        %1944 = vmatpush1.bf16.msra.mxu0 %v1447
        %1945 = vmatprep.subr.bf16.mxu0 %v1452
        %1946 = vmatpush1.bf16.msra.mxu0 %v1451
        %1947 = vmatprep.subr.bf16.mxu0 %v1456
        %1948 = vmatpush1.bf16.msra.mxu0 %v1455
        %1949 = vmatprep.subr.bf16.mxu0 %v1460
        %1950 = vmatpush1.bf16.msra.mxu0 %v1459
        %1951 = vmatprep.subr.bf16.mxu0 %v1464
        %1952 = vmatpush1.bf16.msra.mxu0 %v1463
        %1953 = vmatprep.subr.bf16.mxu0 %v1468
        %1954 = vmatpush1.bf16.msra.mxu0 %v1467
        %1955 = vmatprep.subr.bf16.mxu0 %v1472
        %1956 = vmatpush1.bf16.msra.mxu0 %v1471
        %1957 = vmatprep.subr.bf16.mxu0 %v1476
        %1958 = vmatpush1.bf16.msra.mxu0 %v1475
        %1959 = vmatprep.mubr.bf16.mxu0 %v380
        %1960 = vmatmul.mubr.bf16.gmra.mrb[0].mxu0 %v379
        %v1961 = vpop.f32.mrb[0].mxu0
        %v1962 = vadd.f32 0.0, %v1961
        %v1963 = vpop.f32.mrb[0].mxu0
        %v1964 = vadd.f32 0.0, %v1963
        %v1965 = vpop.f32.mrb[0].mxu0
        %v1966 = vpop.f32.mrb[0].mxu0
        %1967 = vdwg.mxu0
        %1968 = vmatprep.subr.bf16.mxu0 %v1480
        %1969 = vmatpush1.bf16.msra.mxu0 %v1479
        %1970 = vmatprep.subr.bf16.mxu0 %v1484
        %1971 = vmatpush1.bf16.msra.mxu0 %v1483
        %1972 = vmatprep.subr.bf16.mxu0 %v1488
        %1973 = vmatpush1.bf16.msra.mxu0 %v1487
        %1974 = vmatprep.subr.bf16.mxu0 %v1492
        %1975 = vmatpush1.bf16.msra.mxu0 %v1491
        %1976 = vmatprep.subr.bf16.mxu0 %v1496
        %1977 = vmatpush1.bf16.msra.mxu0 %v1495
        %1978 = vmatprep.subr.bf16.mxu0 %v1500
        %1979 = vmatpush1.bf16.msra.mxu0 %v1499
        %1980 = vmatprep.subr.bf16.mxu0 %v1504
        %1981 = vmatpush1.bf16.msra.mxu0 %v1503
        %1982 = vmatprep.subr.bf16.mxu0 %v1508
        %1983 = vmatpush1.bf16.msra.mxu0 %v1507
        %1984 = vmatprep.subr.bf16.mxu0 %v1512
        %1985 = vmatpush1.bf16.msra.mxu0 %v1511
        %1986 = vmatprep.subr.bf16.mxu0 %v1516
        %1987 = vmatpush1.bf16.msra.mxu0 %v1515
        %1988 = vmatprep.subr.bf16.mxu0 %v1520
        %1989 = vmatpush1.bf16.msra.mxu0 %v1519
        %1990 = vmatprep.subr.bf16.mxu0 %v1524
        %1991 = vmatpush1.bf16.msra.mxu0 %v1523
        %1992 = vmatprep.subr.bf16.mxu0 %v1528
        %1993 = vmatpush1.bf16.msra.mxu0 %v1527
        %1994 = vmatprep.subr.bf16.mxu0 %v1532
        %1995 = vmatpush1.bf16.msra.mxu0 %v1531
        %1996 = vmatprep.subr.bf16.mxu0 %v1536
        %1997 = vmatpush1.bf16.msra.mxu0 %v1535
        %1998 = vmatprep.subr.bf16.mxu0 %v1540
        %1999 = vmatpush1.bf16.msra.mxu0 %v1539
        %2000 = vmatprep.mubr.bf16.mxu0 %v382
        %2001 = vmatmul.mubr.bf16.gmra.mrb[0].mxu0 %v381
        %v2002 = vpop.f32.mrb[0].mxu0
        %v2003 = vadd.f32 %v1962, %v2002
        %v2004 = vpop.f32.mrb[0].mxu0
        %v2005 = vadd.f32 %v1964, %v2004
        %v2006 = vpop.f32.mrb[0].mxu0
        %v2007 = vpop.f32.mrb[0].mxu0
        %2008 = vdwg.mxu0
        %2009 = vmatprep.subr.bf16.mxu0 %v1544
        %2010 = vmatpush1.bf16.msra.mxu0 %v1543
        %2011 = vmatprep.subr.bf16.mxu0 %v1548
        %2012 = vmatpush1.bf16.msra.mxu0 %v1547
        %2013 = vmatprep.subr.bf16.mxu0 %v1552
        %2014 = vmatpush1.bf16.msra.mxu0 %v1551
        %2015 = vmatprep.subr.bf16.mxu0 %v1556
        %2016 = vmatpush1.bf16.msra.mxu0 %v1555
        %2017 = vmatprep.subr.bf16.mxu0 %v1560
        %2018 = vmatpush1.bf16.msra.mxu0 %v1559
        %2019 = vmatprep.subr.bf16.mxu0 %v1564
        %2020 = vmatpush1.bf16.msra.mxu0 %v1563
        %2021 = vmatprep.subr.bf16.mxu0 %v1568
        %2022 = vmatpush1.bf16.msra.mxu0 %v1567
        %2023 = vmatprep.subr.bf16.mxu0 %v1572
        %2024 = vmatpush1.bf16.msra.mxu0 %v1571
        %2025 = vmatprep.subr.bf16.mxu0 %v1576
        %2026 = vmatpush1.bf16.msra.mxu0 %v1575
        %2027 = vmatprep.subr.bf16.mxu0 %v1580
        %2028 = vmatpush1.bf16.msra.mxu0 %v1579
        %2029 = vmatprep.subr.bf16.mxu0 %v1584
        %2030 = vmatpush1.bf16.msra.mxu0 %v1583
        %2031 = vmatprep.subr.bf16.mxu0 %v1588
        %2032 = vmatpush1.bf16.msra.mxu0 %v1587
        %2033 = vmatprep.subr.bf16.mxu0 %v1592
        %2034 = vmatpush1.bf16.msra.mxu0 %v1591
        %2035 = vmatprep.subr.bf16.mxu0 %v1596
        %2036 = vmatpush1.bf16.msra.mxu0 %v1595
        %2037 = vmatprep.subr.bf16.mxu0 %v1600
        %2038 = vmatpush1.bf16.msra.mxu0 %v1599
        %2039 = vmatprep.subr.bf16.mxu0 %v1604
        %2040 = vmatpush1.bf16.msra.mxu0 %v1603
        %2041 = vmatprep.mubr.bf16.mxu0 %v384
        %2042 = vmatmul.mubr.bf16.gmra.mrb[0].mxu0 %v383
        %v2043 = vpop.f32.mrb[0].mxu0
        %v2044 = vadd.f32 %v2003, %v2043
        %v2045 = vpop.f32.mrb[0].mxu0
        %v2046 = vadd.f32 %v2005, %v2045
        %v2047 = vpop.f32.mrb[0].mxu0
        %v2048 = vpop.f32.mrb[0].mxu0
        %2049 = vdwg.mxu0
        %2050 = vmatprep.subr.bf16.mxu0 %v1608
        %2051 = vmatpush1.bf16.msra.mxu0 %v1607
        %2052 = vmatprep.subr.bf16.mxu0 %v1612
        %2053 = vmatpush1.bf16.msra.mxu0 %v1611
        %2054 = vmatprep.subr.bf16.mxu0 %v1616
        %2055 = vmatpush1.bf16.msra.mxu0 %v1615
        %2056 = vmatprep.subr.bf16.mxu0 %v1620
        %2057 = vmatpush1.bf16.msra.mxu0 %v1619
        %2058 = vmatprep.subr.bf16.mxu0 %v1624
        %2059 = vmatpush1.bf16.msra.mxu0 %v1623
        %2060 = vmatprep.subr.bf16.mxu0 %v1628
        %2061 = vmatpush1.bf16.msra.mxu0 %v1627
        %2062 = vmatprep.subr.bf16.mxu0 %v1632
        %2063 = vmatpush1.bf16.msra.mxu0 %v1631
        %2064 = vmatprep.subr.bf16.mxu0 %v1636
        %2065 = vmatpush1.bf16.msra.mxu0 %v1635
        %2066 = vmatprep.subr.bf16.mxu0 %v1640
        %2067 = vmatpush1.bf16.msra.mxu0 %v1639
        %2068 = vmatprep.subr.bf16.mxu0 %v1644
        %2069 = vmatpush1.bf16.msra.mxu0 %v1643
        %2070 = vmatprep.subr.bf16.mxu0 %v1648
        %2071 = vmatpush1.bf16.msra.mxu0 %v1647
        %2072 = vmatprep.subr.bf16.mxu0 %v1652
        %2073 = vmatpush1.bf16.msra.mxu0 %v1651
        %2074 = vmatprep.subr.bf16.mxu0 %v1656
        %2075 = vmatpush1.bf16.msra.mxu0 %v1655
        %2076 = vmatprep.subr.bf16.mxu0 %v1660
        %2077 = vmatpush1.bf16.msra.mxu0 %v1659
        %2078 = vmatprep.subr.bf16.mxu0 %v1664
        %2079 = vmatpush1.bf16.msra.mxu0 %v1663
        %2080 = vmatprep.subr.bf16.mxu0 %v1668
        %2081 = vmatpush1.bf16.msra.mxu0 %v1667
        %2082 = vmatprep.mubr.bf16.mxu0 %v386
        %2083 = vmatmul.mubr.bf16.gmra.mrb[0].mxu0 %v385
        %v2084 = vpop.f32.mrb[0].mxu0
        %v2085 = vadd.f32 %v2044, %v2084
        %v2086 = vpop.f32.mrb[0].mxu0
        %v2087 = vadd.f32 %v2046, %v2086
        %v2088 = vpop.f32.mrb[0].mxu0
        %v2089 = vpop.f32.mrb[0].mxu0
        %2090 = vdwg.mxu0
        %2091 = vmatprep.subr.bf16.mxu0 %v1418
        %2092 = vmatpush1.bf16.msra.mxu0 %v1417
        %2093 = vmatprep.subr.bf16.mxu0 %v1422
        %2094 = vmatpush1.bf16.msra.mxu0 %v1421
        %2095 = vmatprep.subr.bf16.mxu0 %v1426
        %2096 = vmatpush1.bf16.msra.mxu0 %v1425
        %2097 = vmatprep.subr.bf16.mxu0 %v1430
        %2098 = vmatpush1.bf16.msra.mxu0 %v1429
        %2099 = vmatprep.subr.bf16.mxu0 %v1434
        %2100 = vmatpush1.bf16.msra.mxu0 %v1433
        %2101 = vmatprep.subr.bf16.mxu0 %v1438
        %2102 = vmatpush1.bf16.msra.mxu0 %v1437
        %2103 = vmatprep.subr.bf16.mxu0 %v1442
        %2104 = vmatpush1.bf16.msra.mxu0 %v1441
        %2105 = vmatprep.subr.bf16.mxu0 %v1446
        %2106 = vmatpush1.bf16.msra.mxu0 %v1445
        %2107 = vmatprep.subr.bf16.mxu0 %v1450
        %2108 = vmatpush1.bf16.msra.mxu0 %v1449
        %2109 = vmatprep.subr.bf16.mxu0 %v1454
        %2110 = vmatpush1.bf16.msra.mxu0 %v1453
        %2111 = vmatprep.subr.bf16.mxu0 %v1458
        %2112 = vmatpush1.bf16.msra.mxu0 %v1457
        %2113 = vmatprep.subr.bf16.mxu0 %v1462
        %2114 = vmatpush1.bf16.msra.mxu0 %v1461
        %2115 = vmatprep.subr.bf16.mxu0 %v1466
        %2116 = vmatpush1.bf16.msra.mxu0 %v1465
        %2117 = vmatprep.subr.bf16.mxu0 %v1470
        %2118 = vmatpush1.bf16.msra.mxu0 %v1469
        %2119 = vmatprep.subr.bf16.mxu0 %v1474
        %2120 = vmatpush1.bf16.msra.mxu0 %v1473
        %2121 = vmatprep.subr.bf16.mxu0 %v1478
        %2122 = vmatpush1.bf16.msra.mxu0 %v1477
        %2123 = vmatprep.mubr.bf16.mxu0 %v380
        %2124 = vmatmul.mubr.bf16.gmra.mrb[0].mxu0 %v379
        %v2125 = vpop.f32.mrb[0].mxu0
        %v2126 = vadd.f32 0.0, %v2125
        %v2127 = vpop.f32.mrb[0].mxu0
        %v2128 = vadd.f32 0.0, %v2127
        %v2129 = vpop.f32.mrb[0].mxu0
        %v2130 = vpop.f32.mrb[0].mxu0
        %2131 = vdwg.mxu0
        %2132 = vmatprep.subr.bf16.mxu0 %v1482
        %2133 = vmatpush1.bf16.msra.mxu0 %v1481
        %2134 = vmatprep.subr.bf16.mxu0 %v1486
        %2135 = vmatpush1.bf16.msra.mxu0 %v1485
        %2136 = vmatprep.subr.bf16.mxu0 %v1490
        %2137 = vmatpush1.bf16.msra.mxu0 %v1489
        %2138 = vmatprep.subr.bf16.mxu0 %v1494
        %2139 = vmatpush1.bf16.msra.mxu0 %v1493
        %2140 = vmatprep.subr.bf16.mxu0 %v1498
        %2141 = vmatpush1.bf16.msra.mxu0 %v1497
        %2142 = vmatprep.subr.bf16.mxu0 %v1502
        %2143 = vmatpush1.bf16.msra.mxu0 %v1501
        %2144 = vmatprep.subr.bf16.mxu0 %v1506
        %2145 = vmatpush1.bf16.msra.mxu0 %v1505
        %2146 = vmatprep.subr.bf16.mxu0 %v1510
        %2147 = vmatpush1.bf16.msra.mxu0 %v1509
        %2148 = vmatprep.subr.bf16.mxu0 %v1514
        %2149 = vmatpush1.bf16.msra.mxu0 %v1513
        %2150 = vmatprep.subr.bf16.mxu0 %v1518
        %2151 = vmatpush1.bf16.msra.mxu0 %v1517
        %2152 = vmatprep.subr.bf16.mxu0 %v1522
        %2153 = vmatpush1.bf16.msra.mxu0 %v1521
        %2154 = vmatprep.subr.bf16.mxu0 %v1526
        %2155 = vmatpush1.bf16.msra.mxu0 %v1525
        %2156 = vmatprep.subr.bf16.mxu0 %v1530
        %2157 = vmatpush1.bf16.msra.mxu0 %v1529
        %2158 = vmatprep.subr.bf16.mxu0 %v1534
        %2159 = vmatpush1.bf16.msra.mxu0 %v1533
        %2160 = vmatprep.subr.bf16.mxu0 %v1538
        %2161 = vmatpush1.bf16.msra.mxu0 %v1537
        %2162 = vmatprep.subr.bf16.mxu0 %v1542
        %2163 = vmatpush1.bf16.msra.mxu0 %v1541
        %2164 = vmatprep.mubr.bf16.mxu0 %v382
        %2165 = vmatmul.mubr.bf16.gmra.mrb[0].mxu0 %v381
        %v2166 = vpop.f32.mrb[0].mxu0
        %v2167 = vadd.f32 %v2126, %v2166
        %v2168 = vpop.f32.mrb[0].mxu0
        %v2169 = vadd.f32 %v2128, %v2168
        %v2170 = vpop.f32.mrb[0].mxu0
        %v2171 = vpop.f32.mrb[0].mxu0
        %2172 = vdwg.mxu0
        %2173 = vmatprep.subr.bf16.mxu0 %v1546
        %2174 = vmatpush1.bf16.msra.mxu0 %v1545
        %2175 = vmatprep.subr.bf16.mxu0 %v1550
        %2176 = vmatpush1.bf16.msra.mxu0 %v1549
        %2177 = vmatprep.subr.bf16.mxu0 %v1554
        %2178 = vmatpush1.bf16.msra.mxu0 %v1553
        %2179 = vmatprep.subr.bf16.mxu0 %v1558
        %2180 = vmatpush1.bf16.msra.mxu0 %v1557
        %2181 = vmatprep.subr.bf16.mxu0 %v1562
        %2182 = vmatpush1.bf16.msra.mxu0 %v1561
        %2183 = vmatprep.subr.bf16.mxu0 %v1566
        %2184 = vmatpush1.bf16.msra.mxu0 %v1565
        %2185 = vmatprep.subr.bf16.mxu0 %v1570
        %2186 = vmatpush1.bf16.msra.mxu0 %v1569
        %2187 = vmatprep.subr.bf16.mxu0 %v1574
        %2188 = vmatpush1.bf16.msra.mxu0 %v1573
        %2189 = vmatprep.subr.bf16.mxu0 %v1578
        %2190 = vmatpush1.bf16.msra.mxu0 %v1577
        %2191 = vmatprep.subr.bf16.mxu0 %v1582
        %2192 = vmatpush1.bf16.msra.mxu0 %v1581
        %2193 = vmatprep.subr.bf16.mxu0 %v1586
        %2194 = vmatpush1.bf16.msra.mxu0 %v1585
        %2195 = vmatprep.subr.bf16.mxu0 %v1590
        %2196 = vmatpush1.bf16.msra.mxu0 %v1589
        %2197 = vmatprep.subr.bf16.mxu0 %v1594
        %2198 = vmatpush1.bf16.msra.mxu0 %v1593
        %2199 = vmatprep.subr.bf16.mxu0 %v1598
        %2200 = vmatpush1.bf16.msra.mxu0 %v1597
        %2201 = vmatprep.subr.bf16.mxu0 %v1602
        %2202 = vmatpush1.bf16.msra.mxu0 %v1601
        %2203 = vmatprep.subr.bf16.mxu0 %v1606
        %2204 = vmatpush1.bf16.msra.mxu0 %v1605
        %2205 = vmatprep.mubr.bf16.mxu0 %v384
        %2206 = vmatmul.mubr.bf16.gmra.mrb[0].mxu0 %v383
        %v2207 = vpop.f32.mrb[0].mxu0
        %v2208 = vadd.f32 %v2167, %v2207
        %v2209 = vpop.f32.mrb[0].mxu0
        %v2210 = vadd.f32 %v2169, %v2209
        %v2211 = vpop.f32.mrb[0].mxu0
        %v2212 = vpop.f32.mrb[0].mxu0
        %2213 = vdwg.mxu0
        %2214 = vmatprep.subr.bf16.mxu0 %v1610
        %2215 = vmatpush1.bf16.msra.mxu0 %v1609
        %2216 = vmatprep.subr.bf16.mxu0 %v1614
        %2217 = vmatpush1.bf16.msra.mxu0 %v1613
        %2218 = vmatprep.subr.bf16.mxu0 %v1618
        %2219 = vmatpush1.bf16.msra.mxu0 %v1617
        %2220 = vmatprep.subr.bf16.mxu0 %v1622
        %2221 = vmatpush1.bf16.msra.mxu0 %v1621
        %2222 = vmatprep.subr.bf16.mxu0 %v1626
        %2223 = vmatpush1.bf16.msra.mxu0 %v1625
        %2224 = vmatprep.subr.bf16.mxu0 %v1630
        %2225 = vmatpush1.bf16.msra.mxu0 %v1629
        %2226 = vmatprep.subr.bf16.mxu0 %v1634
        %2227 = vmatpush1.bf16.msra.mxu0 %v1633
        %2228 = vmatprep.subr.bf16.mxu0 %v1638
        %2229 = vmatpush1.bf16.msra.mxu0 %v1637
        %2230 = vmatprep.subr.bf16.mxu0 %v1642
        %2231 = vmatpush1.bf16.msra.mxu0 %v1641
        %2232 = vmatprep.subr.bf16.mxu0 %v1646
        %2233 = vmatpush1.bf16.msra.mxu0 %v1645
        %2234 = vmatprep.subr.bf16.mxu0 %v1650
        %2235 = vmatpush1.bf16.msra.mxu0 %v1649
        %2236 = vmatprep.subr.bf16.mxu0 %v1654
        %2237 = vmatpush1.bf16.msra.mxu0 %v1653
        %2238 = vmatprep.subr.bf16.mxu0 %v1658
        %2239 = vmatpush1.bf16.msra.mxu0 %v1657
        %2240 = vmatprep.subr.bf16.mxu0 %v1662
        %2241 = vmatpush1.bf16.msra.mxu0 %v1661
        %2242 = vmatprep.subr.bf16.mxu0 %v1666
        %2243 = vmatpush1.bf16.msra.mxu0 %v1665
        %2244 = vmatprep.subr.bf16.mxu0 %v1670
        %2245 = vmatpush1.bf16.msra.mxu0 %v1669
        %2246 = vmatprep.mubr.bf16.mxu0 %v386
        %2247 = vmatmul.mubr.bf16.gmra.mrb[0].mxu0 %v385
        %v2248 = vpop.f32.mrb[0].mxu0
        %v2249 = vadd.f32 %v2208, %v2248
        %v2250 = vpop.f32.mrb[0].mxu0
        %v2251 = vadd.f32 %v2210, %v2250
        %v2252 = vpop.f32.mrb[0].mxu0
        %v2253 = vpop.f32.mrb[0].mxu0
        %2254 = vdwg.mxu0
        %v2255 = vadd.f32 %v387, %v2085
        %v2256 = vadd.f32 %v388, %v2087
        %v2257 = vadd.f32 %v389, %v2249
        %v2258 = vadd.f32 %v390, %v2251
        %2259 = vst [vmem:[%s330] sm:$0xff] %v2255
        %2260 = vst [vmem:[%s330 + $0x8] sm:$0xff] %v2256
        %2261 = vst [vmem:[%s330 + $0x10] sm:$0xff] %v2257
        %2262 = vst [vmem:[%s330 + $0x18] sm:$0xff] %v2258
        // Predicated region
        $region57: #{tpu_custom_call.1} parent=35 // pred_check
          %p2263 = pneg %p336
        $region58: #{tpu_custom_call.1} parent=35 // pred_check_branch
          %2265 = sbr.rel (%p2263) target = $region60
        $region59: #{tpu_custom_call.1} parent=35 // pred_region
          %v2266 = vld [vmem:[%s330] sm:$0xff]
          %v2267 = vld [vmem:[%s330 + $0x8] sm:$0xff]
          %v2268 = vld [vmem:[%s330 + $0x10] sm:$0xff]
          %v2269 = vld [vmem:[%s330 + $0x18] sm:$0xff]
          %s2270 = smul.u32 %s32, 512
          %s2271 = sshra.s32 %s2270, 7
          %s2272 = sand.u32 %s2270, 127
          %s2273 = smul.addr %s2271, 8
          %s2274 = scalar_lea.vmem [#allocation6], %s2273
          %v2275 = vld [vmem:[%s2274] sm:$0xff]
          %v2276 = vld [vmem:[%s2274 + $0x8] sm:$0xff]
          %v2277 = vld [vmem:[%s2274 + $0x10] sm:$0xff]
          %v2278 = vld [vmem:[%s2274 + $0x18] sm:$0xff]
          %s2279 = sld [smem:[#allocation2]]
          %v2280 = vstv %s2279
          %v2281 = vmul.f32 %v2280, %v2275
          %v2282 = vmul.f32 %v2280, %v2276
          %v2283 = vmul.f32 %v2280, %v2277
          %v2284 = vmul.f32 %v2280, %v2278
          %s2285 = sld [smem:[#allocation2 + $0x1]]
          %v2286 = vstv %s2285
          %v2287 = vmul.f32 %v2286, %v2266
          %v2288 = vmul.f32 %v2286, %v2267
          %v2289 = vmul.f32 %v2286, %v2268
          %v2290 = vmul.f32 %v2286, %v2269
          %v2291 = vsub.f32 %v2281, %v2287
          %v2292 = vsub.f32 %v2282, %v2288
          %v2293 = vsub.f32 %v2283, %v2289
          %v2294 = vsub.f32 %v2284, %v2290
          %2295 = vst [vmem:[%s323] sm:$0xff] %v2291
          %2296 = vst [vmem:[%s323 + $0x8] sm:$0xff] %v2292
          %2297 = vst [vmem:[%s323 + $0x10] sm:$0xff] %v2293
          %2298 = vst [vmem:[%s323 + $0x18] sm:$0xff] %v2294
          %s2299 = sld [smem:[#allocation2 + $0x2]]
          %v2300 = vstv %s2299
          %v2301 = vmul.f32 %v2300, %v2266
          %v2302 = vmul.f32 %v2300, %v2267
          %v2303 = vmul.f32 %v2300, %v2268
          %v2304 = vmul.f32 %v2300, %v2269
          %2305 = vst [vmem:[%s330] sm:$0xff] %v2301
          %2306 = vst [vmem:[%s330 + $0x8] sm:$0xff] %v2302
          %2307 = vst [vmem:[%s330 + $0x10] sm:$0xff] %v2303
          %2308 = vst [vmem:[%s330 + $0x18] sm:$0xff] %v2304
        $region60: #{tpu_custom_call.1} parent=35 // pred_fallthru
          _
        %s2309 = sand.u32 %s144, 1
        %s2310 = scalar_lea.sflag [#allocation4], %s2309
        %s2311 = sand.u32 %s144, 1
        %s2312 = smul.addr %s2311, 32
        %s2313 = scalar_lea.vmem [#allocation10], %s2312
        %s2314 = sand.u32 %s170, 1
        %s2315 = scalar_lea.sflag [#allocation12], %s2314
        %s2316 = sand.u32 %s170, 1
        %s2317 = smul.addr %s2316, 32
        %s2318 = scalar_lea.vmem [#allocation11], %s2317
        // Predicated region
        $region61: #{tpu_custom_call.1} parent=35 // pred_check
          %p2319 = pneg %p154
        $region62: #{tpu_custom_call.1} parent=35 // pred_check_branch
          %2321 = sbr.rel (%p2319) target = $region64
        $region63: #{tpu_custom_call.1} parent=35 // pred_region
          %s2322 = smul.u32 4, %s32
          %s2324 = ssub.s32 512, 512
          %2325 = vsyncadd %s2310, %s2324
          %s2326 = smul.addr %s2322, 128
          %s2327 = scalar_lea.hbm %s4, %s2326
          %s2329 = sshll.u32 %s2313, 4
          %s2330 = int_to_ptr.vmem [resolvable:$true] %s2329
          %2332 = dma.vmem_to_hbm [thread:$0]  %s2330, 512, %s2327, %s2310
        $region64: #{tpu_custom_call.1} parent=35 // pred_fallthru
          _
        // Predicated region
        $region65: #{tpu_custom_call.1} parent=35 // pred_check
          %p2333 = pneg %p180
        $region66: #{tpu_custom_call.1} parent=35 // pred_check_branch
          %2335 = sbr.rel (%p2333) target = $region68
        $region67: #{tpu_custom_call.1} parent=35 // pred_region
          %s2336 = smul.u32 4, %s32
          %s2338 = ssub.s32 512, 512
          %2339 = vsyncadd %s2315, %s2338
          %s2340 = smul.addr %s2336, 128
          %s2341 = scalar_lea.hbm %s5, %s2340
          %s2343 = sshll.u32 %s2318, 4
          %s2344 = int_to_ptr.vmem [resolvable:$true] %s2343
          %2346 = dma.vmem_to_hbm [thread:$0]  %s2344, 512, %s2341, %s2315
        $region68: #{tpu_custom_call.1} parent=35 // pred_fallthru
          _
      $region36: #{tpu_custom_call.1} parent=5 // pred_fallthru
        _
      %p2347 = scmp.le.s32.totalorder 2, %s23
      // Predicated region
      $region69: #{tpu_custom_call.1} parent=5 // pred_check
        %p2348 = pneg %p2347
      $region70: #{tpu_custom_call.1} parent=5 // pred_check_branch
        %2350 = sbr.rel (%p2348) target = $region72
      $region71: #{tpu_custom_call.1} parent=5 // pred_region
        %s2351 = ssub.s32 %s23, 2
        // Predicated region
        $region73: #{tpu_custom_call.1} parent=71 // pred_check
          %p2352 = pneg %p160
        $region74: #{tpu_custom_call.1} parent=71 // pred_check_branch
          %2354 = sbr.rel (%p2352) target = $region76
        $region75: #{tpu_custom_call.1} parent=71 // pred_region
          %s2355 = sand.u32 %s145, 1
          %s2356 = scalar_lea.sflag [#allocation4], %s2355
          %s2357 = sand.u32 %s145, 1
          %s2358 = smul.addr %s2357, 32
          %s2359 = scalar_lea.vmem [#allocation10], %s2358
          %2360 = dma.done %s2356, 512
        $region76: #{tpu_custom_call.1} parent=71 // pred_fallthru
          _
        // Predicated region
        $region77: #{tpu_custom_call.1} parent=71 // pred_check
          %p2361 = pneg %p186
        $region78: #{tpu_custom_call.1} parent=71 // pred_check_branch
          %2363 = sbr.rel (%p2361) target = $region80
        $region79: #{tpu_custom_call.1} parent=71 // pred_region
          %s2364 = sand.u32 %s171, 1
          %s2365 = scalar_lea.sflag [#allocation12], %s2364
          %s2366 = sand.u32 %s171, 1
          %s2367 = smul.addr %s2366, 32
          %s2368 = scalar_lea.vmem [#allocation11], %s2367
          %2369 = dma.done %s2365, 512
        $region80: #{tpu_custom_call.1} parent=71 // pred_fallthru
          _
      $region72: #{tpu_custom_call.1} parent=5 // pred_fallthru
        _
    $region6: #{tpu_custom_call.1} parent=1 // loop_footer
      %s27 = sadd.s32 1, %s23
    $region7: #{tpu_custom_call.1} parent=1 // loop_footer_branch
      %22 = sbr.rel target = $region3
    $region8: #{tpu_custom_call.1} parent=1 // loop_exit
      _
    %2370 = vsyncpa [#allocation3], 1
    %s2371 = scalar_lea.sflag [#allocation3], 1
    %2372 = vsyncpa %s2371, 1
    %2373 = vsyncpa [#allocation8], 1
    %s2374 = scalar_lea.sflag [#allocation8], 1
    %2375 = vsyncpa %s2374, 1
    %2376 = vsyncpa [#allocation4], 1
    %s2377 = scalar_lea.sflag [#allocation4], 1
    %2378 = vsyncpa %s2377, 1
    %2379 = vsyncpa [#allocation12], 1
    %s2380 = scalar_lea.sflag [#allocation12], 1
    %2381 = vsyncpa %s2380, 1
    %2382 = vsyncpa [#allocation5], 1
    %s2383 = scalar_lea.sflag [#allocation5], 1
    %2384 = vsyncpa %s2383, 1

</llo_original>
